<compile_context>
chip_gen: v6e
topology: v6e:2x2x1
jax: 0.10.0
libtpu: 0.0.40
codegen_flags: <defaults>
</compile_context>

<pallas_src>
import functools

import jax
import jax.numpy as jnp
from jax.experimental import pallas as pl
from jax.experimental.pallas import tpu as pltpu

NEG_SLOPE = 0.2   # LeakyReLU slope from the PyTorch module


def _shift_flat(img, s, hw, use_roll):
    """out[:, p] = img[:, (p + s) mod hw] for a static Python int s."""
    k = s % hw
    if k == 0:
        return img
    if use_roll:
        # pltpu.roll follows jnp.roll semantics: out[p] = in[(p - shift) mod hw].
        return pltpu.roll(img, hw - k, axis=1)
    # Fallback: identical math via two lane slices + concat (no pltpu.roll).
    return jnp.concatenate([img[:, k:], img[:, :k]], axis=1)


def _fused_conv_layer_kernel(x_ref, w1_ref, b1_ref, w2_ref, b2_ref, m_ref,
                             o_ref, *, H, W, neg_slope, use_roll):
    """conv3x3 -> LeakyReLU -> conv3x3 -> LeakyReLU on a block of images.

    x_ref : (IMG, Cin, H*W)       o_ref : (IMG, C2, H*W)   (flat NCHW)
    w1_ref: (C1, 9*Cin)  b1_ref: (C1, 1)
    w2_ref: (C2, 9*C1)   b2_ref: (C2, 1)
    m_ref : (9, H*W) fp32 border masks, row t = dy*3+dx.
    """
    HW = H * W
    masks = m_ref[...]                        # (9, HW)
    w1, b1 = w1_ref[...], b1_ref[...]
    w2, b2 = w2_ref[...], b2_ref[...]

    # Tap (dy, dx) reads img[p + (dy-1)*W + (dx-1)] (zero outside the image).
    offs = [(dy - 1) * W + (dx - 1) for dy in range(3) for dx in range(3)]

    def im2col(img):
        """img (C, HW) -> patches (9*C, HW); rows ordered (tap, channel)."""
        cols = []
        for t, s in enumerate(offs):
            if s == 0:                        # centre tap: identity, mask == 1
                cols.append(img)
            else:
                shifted = _shift_flat(img, s, HW, use_roll)
                cols.append(shifted * masks[t:t + 1, :])
        return jnp.concatenate(cols, axis=0)  # K stacked along sublanes

    def conv_lrelu(img, w2d, b2d):
        patches = im2col(img)                                         # (9*C, HW)
        acc = jnp.dot(w2d, patches, preferred_element_type=jnp.float32)  # (Cout, HW)
        acc = acc + b2d                                               # lane bcast
        return jnp.where(acc >= 0, acc, neg_slope * acc)

    for i in range(x_ref.shape[0]):           # unrolled over images in block
        img = x_ref[i].astype(jnp.float32)    # (Cin, HW), lane-dense
        h1 = conv_lrelu(img, w1, b1)          # (C1, HW)  stays in registers/VMEM
        h2 = conv_lrelu(h1, w2, b2)           # (C2, HW)
        o_ref[i] = h2.astype(o_ref.dtype)     # lane-dense (unmasked) store


def _tap_masks(H, W):
    """(9, H*W) fp32: row t = dy*3+dx is 1 where (y+dy-1, x+dx-1) is in-bounds."""
    p = jnp.arange(H * W, dtype=jnp.int32)
    y, x = p // W, p % W
    rows = []
    for dy in (-1, 0, 1):
        for dx in (-1, 0, 1):
            ok = (y + dy >= 0) & (y + dy < H) & (x + dx >= 0) & (x + dx < W)
            rows.append(ok)
    return jnp.stack(rows, 0).astype(jnp.float32)


@functools.partial(jax.jit, static_argnames=("use_roll", "images_per_step"))
def conv_layer_forward(x_nchw, params, use_roll=True, images_per_step=None):
    """conv3x3 -> LeakyReLU(0.2) -> conv3x3 -> LeakyReLU(0.2); NCHW in/out."""
    (w1, b1), (w2, b2) = params
    N, Cin, H, W = x_nchw.shape
    C1, C2 = w1.shape[0], w2.shape[0]
    HW = H * W

    if images_per_step is None:
        # <= 2 grid steps: one per v7x TensorCore.  On single-TC v5e/v6e pass
        # images_per_step=N to fold the whole batch into one step.
        images_per_step = N if N % 2 else max(1, N // 2)
    assert N % images_per_step == 0
    grid_n = N // images_per_step

    # Free reshape: NCHW is already channels-on-sublanes / spatial-on-lanes.
    x_flat = x_nchw.reshape(N, Cin, HW)

    # One-time weight relayout: OIHW -> (Cout, 9*Cin), columns ordered (dy, dx, ci)
    # to match the in-kernel tap stacking order.
    w1_2d = jnp.transpose(w1, (0, 2, 3, 1)).reshape(C1, 9 * Cin)
    w2_2d = jnp.transpose(w2, (0, 2, 3, 1)).reshape(C2, 9 * C1)
    b1_2d = b1.reshape(C1, 1)
    b2_2d = b2.reshape(C2, 1)
    masks = _tap_masks(H, W)

    kernel = functools.partial(_fused_conv_layer_kernel, H=H, W=W,
                               neg_slope=NEG_SLOPE, use_roll=use_roll)
    out_flat = pl.pallas_call(
        kernel,
        out_shape=jax.ShapeDtypeStruct((N, C2, HW), x_nchw.dtype),
        grid=(grid_n,),
        in_specs=[
            pl.BlockSpec((images_per_step, Cin, HW), lambda g: (g, 0, 0)),
            pl.BlockSpec((C1, 9 * Cin), lambda g: (0, 0)),
            pl.BlockSpec((C1, 1), lambda g: (0, 0)),
            pl.BlockSpec((C2, 9 * C1), lambda g: (0, 0)),
            pl.BlockSpec((C2, 1), lambda g: (0, 0)),
            pl.BlockSpec((9, HW), lambda g: (0, 0)),
        ],
        out_specs=pl.BlockSpec((images_per_step, C2, HW), lambda g: (g, 0, 0)),
        compiler_params=pltpu.CompilerParams(
            dimension_semantics=("parallel",)),
    )(x_flat, w1_2d, b1_2d, w2_2d, b2_2d, masks)

    return out_flat.reshape(N, C2, H, W)       # free reshape, still NCHW


# ---------------------------------------------------------------------------
# Params init (nn.Conv2d-like, OIHW) + pure-JAX reference.
# ---------------------------------------------------------------------------
def init_conv_params(key, cin, cout):
    kw, kb = jax.random.split(key)
    fan_in = cin * 3 * 3
    bound = 1.0 / jnp.sqrt(fan_in)
    w = jax.random.uniform(kw, (cout, cin, 3, 3), jnp.float32, -bound, bound)
    b = jax.random.uniform(kb, (cout,), jnp.float32, -bound, bound)
    return w, b


def _reference_forward(x_nchw, params, neg_slope=NEG_SLOPE):
    out = x_nchw
    for w, b in params:   # w: (Cout, Cin, 3, 3) OIHW
        out = jax.lax.conv_general_dilated(
            out, w, window_strides=(1, 1), padding=((1, 1), (1, 1)),
            dimension_numbers=("NCHW", "OIHW", "NCHW"))
        out = out + b.reshape(1, -1, 1, 1)
        out = jnp.where(out >= 0, out, neg_slope * out)
    return out


if __name__ == "__main__":
    key = jax.random.PRNGKey(0)
    kx, k1, k2 = jax.random.split(key, 3)

    in_channels, out_channels = 4, 8
    N, H, W = 2, 16, 16
    x = jax.random.normal(kx, (N, in_channels, H, W), jnp.float32)

    params = (
        init_conv_params(k1, in_channels, out_channels),
        init_conv_params(k2, out_channels, out_channels),
    )

    ref = jax.block_until_ready(_reference_forward(x, params))

    def _run(use_roll):
        out = jax.block_until_ready(
            conv_layer_forward(x, params, use_roll=use_roll))
        ok = bool(jnp.allclose(out, ref, atol=1e-4, rtol=1e-4))
        return out, ok

    try:
        out, ok = _run(True)              # primary path: pltpu.roll taps
    except Exception:
        out, ok = None, False
    if not ok:
        # Safety net: identical math with slice-based lane shifts.
        out, ok = _run(False)

    assert out is not None and out.shape == (N, out_channels, H, W)
    assert ok, "mismatch vs reference"
    print("KERNEL_OK")
</pallas_src>

<mosaic_0001>
module attributes {stable_mosaic.version = 11 : i64} {
  func.func @_fused_conv_layer_kernel(%arg0: i32, %arg1: memref<1x4x256xf32, #tpu.memory_space<vmem>>, %arg2: memref<8x36xf32, #tpu.memory_space<vmem>>, %arg3: memref<8x1xf32, #tpu.memory_space<vmem>>, %arg4: memref<8x72xf32, #tpu.memory_space<vmem>>, %arg5: memref<8x1xf32, #tpu.memory_space<vmem>>, %arg6: memref<9x256xf32, #tpu.memory_space<vmem>>, %arg7: memref<1x8x256xf32, #tpu.memory_space<vmem>>) attributes {dimension_semantics = [#tpu.dimension_semantics<parallel>], iteration_bounds = array<i64: 2>, scalar_prefetch = 0 : i64, scratch_operands = 0 : i64, tpu.core_type = #tpu.core_type<tc>, window_params = [{transform_indices = @transform_0, window_bounds = array<i64: 1, 4, 256>}, {pipeline_mode = #tpu.pipeline_mode<synchronous>, transform_indices = @transform_1, window_bounds = array<i64: 8, 36>}, {pipeline_mode = #tpu.pipeline_mode<synchronous>, transform_indices = @transform_2, window_bounds = array<i64: 8, 1>}, {pipeline_mode = #tpu.pipeline_mode<synchronous>, transform_indices = @transform_3, window_bounds = array<i64: 8, 72>}, {pipeline_mode = #tpu.pipeline_mode<synchronous>, transform_indices = @transform_4, window_bounds = array<i64: 8, 1>}, {pipeline_mode = #tpu.pipeline_mode<synchronous>, transform_indices = @transform_5, window_bounds = array<i64: 9, 256>}, {transform_indices = @transform_6, window_bounds = array<i64: 1, 8, 256>}]} {
    %c0 = arith.constant 0 : index
    %c0_0 = arith.constant 0 : index
    %0 = vector.load %arg6[%c0, %c0_0] : memref<9x256xf32, #tpu.memory_space<vmem>>, vector<9x256xf32>
    %c0_1 = arith.constant 0 : index
    %c0_2 = arith.constant 0 : index
    %1 = vector.load %arg2[%c0_1, %c0_2] : memref<8x36xf32, #tpu.memory_space<vmem>>, vector<8x36xf32>
    %c0_3 = arith.constant 0 : index
    %c0_4 = arith.constant 0 : index
    %2 = vector.load %arg3[%c0_3, %c0_4] : memref<8x1xf32, #tpu.memory_space<vmem>>, vector<8x1xf32>
    %c0_5 = arith.constant 0 : index
    %c0_6 = arith.constant 0 : index
    %3 = vector.load %arg4[%c0_5, %c0_6] : memref<8x72xf32, #tpu.memory_space<vmem>>, vector<8x72xf32>
    %c0_7 = arith.constant 0 : index
    %c0_8 = arith.constant 0 : index
    %4 = vector.load %arg5[%c0_7, %c0_8] : memref<8x1xf32, #tpu.memory_space<vmem>>, vector<8x1xf32>
    %c0_9 = arith.constant 0 : index
    %c0_10 = arith.constant 0 : index
    %c0_11 = arith.constant 0 : index
    %5 = vector.load %arg1[%c0_9, %c0_10, %c0_11] : memref<1x4x256xf32, #tpu.memory_space<vmem>>, vector<1x4x256xf32>
    %6 = vector.shape_cast %5 : vector<1x4x256xf32> to vector<4x256xf32>
    %c17_i32 = arith.constant 17 : i32
    %7 = tpu.dynamic_rotate %6 by %c17_i32 dim 1 : vector<4x256xf32>, i32 -> vector<4x256xf32>
    %8 = vector.extract_strided_slice %0 {offsets = [0, 0], sizes = [1, 256], strides = [1, 1]} : vector<9x256xf32> to vector<1x256xf32>
    %9 = vector.broadcast %8 : vector<1x256xf32> to vector<4x256xf32>
    %10 = arith.mulf %7, %9 : vector<4x256xf32>
    %c16_i32 = arith.constant 16 : i32
    %11 = tpu.dynamic_rotate %6 by %c16_i32 dim 1 : vector<4x256xf32>, i32 -> vector<4x256xf32>
    %12 = vector.extract_strided_slice %0 {offsets = [1, 0], sizes = [1, 256], strides = [1, 1]} : vector<9x256xf32> to vector<1x256xf32>
    %13 = vector.broadcast %12 : vector<1x256xf32> to vector<4x256xf32>
    %14 = arith.mulf %11, %13 : vector<4x256xf32>
    %c15_i32 = arith.constant 15 : i32
    %15 = tpu.dynamic_rotate %6 by %c15_i32 dim 1 : vector<4x256xf32>, i32 -> vector<4x256xf32>
    %16 = vector.extract_strided_slice %0 {offsets = [2, 0], sizes = [1, 256], strides = [1, 1]} : vector<9x256xf32> to vector<1x256xf32>
    %17 = vector.broadcast %16 : vector<1x256xf32> to vector<4x256xf32>
    %18 = arith.mulf %15, %17 : vector<4x256xf32>
    %c1_i32 = arith.constant 1 : i32
    %19 = tpu.dynamic_rotate %6 by %c1_i32 dim 1 : vector<4x256xf32>, i32 -> vector<4x256xf32>
    %20 = vector.extract_strided_slice %0 {offsets = [3, 0], sizes = [1, 256], strides = [1, 1]} : vector<9x256xf32> to vector<1x256xf32>
    %21 = vector.broadcast %20 : vector<1x256xf32> to vector<4x256xf32>
    %22 = arith.mulf %19, %21 : vector<4x256xf32>
    %c255_i32 = arith.constant 255 : i32
    %23 = tpu.dynamic_rotate %6 by %c255_i32 dim 1 : vector<4x256xf32>, i32 -> vector<4x256xf32>
    %24 = vector.extract_strided_slice %0 {offsets = [5, 0], sizes = [1, 256], strides = [1, 1]} : vector<9x256xf32> to vector<1x256xf32>
    %25 = vector.broadcast %24 : vector<1x256xf32> to vector<4x256xf32>
    %26 = arith.mulf %23, %25 : vector<4x256xf32>
    %c241_i32 = arith.constant 241 : i32
    %27 = tpu.dynamic_rotate %6 by %c241_i32 dim 1 : vector<4x256xf32>, i32 -> vector<4x256xf32>
    %28 = vector.extract_strided_slice %0 {offsets = [6, 0], sizes = [1, 256], strides = [1, 1]} : vector<9x256xf32> to vector<1x256xf32>
    %29 = vector.broadcast %28 : vector<1x256xf32> to vector<4x256xf32>
    %30 = arith.mulf %27, %29 : vector<4x256xf32>
    %c240_i32 = arith.constant 240 : i32
    %31 = tpu.dynamic_rotate %6 by %c240_i32 dim 1 : vector<4x256xf32>, i32 -> vector<4x256xf32>
    %32 = vector.extract_strided_slice %0 {offsets = [7, 0], sizes = [1, 256], strides = [1, 1]} : vector<9x256xf32> to vector<1x256xf32>
    %33 = vector.broadcast %32 : vector<1x256xf32> to vector<4x256xf32>
    %34 = arith.mulf %31, %33 : vector<4x256xf32>
    %c239_i32 = arith.constant 239 : i32
    %35 = tpu.dynamic_rotate %6 by %c239_i32 dim 1 : vector<4x256xf32>, i32 -> vector<4x256xf32>
    %36 = vector.extract_strided_slice %0 {offsets = [8, 0], sizes = [1, 256], strides = [1, 1]} : vector<9x256xf32> to vector<1x256xf32>
    %37 = vector.broadcast %36 : vector<1x256xf32> to vector<4x256xf32>
    %38 = arith.mulf %35, %37 : vector<4x256xf32>
    %39 = tpu.concatenate %10, %14, %18, %22, %6, %26, %30, %34, %38 in 0 : vector<4x256xf32>, vector<4x256xf32>, vector<4x256xf32>, vector<4x256xf32>, vector<4x256xf32>, vector<4x256xf32>, vector<4x256xf32>, vector<4x256xf32>, vector<4x256xf32> -> vector<36x256xf32>
    %cst = arith.constant dense<0.000000e+00> : vector<8x256xf32>
    %40 = tpu.matmul %1, %39, %cst {dimension_numbers = #tpu.dot_dimension_numbers<[1], [0], [0], [1], [0, 0, 1, 1], [], []>} : vector<8x36xf32>, vector<36x256xf32>, vector<8x256xf32> -> vector<8x256xf32>
    %41 = vector.broadcast %2 : vector<8x1xf32> to vector<8x256xf32>
    %42 = arith.addf %40, %41 : vector<8x256xf32>
    %cst_12 = arith.constant 0.000000e+00 : f32
    %43 = vector.broadcast %cst_12 : f32 to vector<8x256xf32>
    %44 = arith.cmpf oge, %42, %43 : vector<8x256xf32>
    %cst_13 = arith.constant 2.000000e-01 : f32
    %45 = vector.broadcast %cst_13 : f32 to vector<8x256xf32>
    %46 = arith.mulf %45, %42 : vector<8x256xf32>
    %47 = arith.select %44, %42, %46 : vector<8x256xi1>, vector<8x256xf32>
    %c17_i32_14 = arith.constant 17 : i32
    %48 = tpu.dynamic_rotate %47 by %c17_i32_14 dim 1 : vector<8x256xf32>, i32 -> vector<8x256xf32>
    %49 = vector.extract_strided_slice %0 {offsets = [0, 0], sizes = [1, 256], strides = [1, 1]} : vector<9x256xf32> to vector<1x256xf32>
    %50 = vector.broadcast %49 : vector<1x256xf32> to vector<8x256xf32>
    %51 = arith.mulf %48, %50 : vector<8x256xf32>
    %c16_i32_15 = arith.constant 16 : i32
    %52 = tpu.dynamic_rotate %47 by %c16_i32_15 dim 1 : vector<8x256xf32>, i32 -> vector<8x256xf32>
    %53 = vector.extract_strided_slice %0 {offsets = [1, 0], sizes = [1, 256], strides = [1, 1]} : vector<9x256xf32> to vector<1x256xf32>
    %54 = vector.broadcast %53 : vector<1x256xf32> to vector<8x256xf32>
    %55 = arith.mulf %52, %54 : vector<8x256xf32>
    %c15_i32_16 = arith.constant 15 : i32
    %56 = tpu.dynamic_rotate %47 by %c15_i32_16 dim 1 : vector<8x256xf32>, i32 -> vector<8x256xf32>
    %57 = vector.extract_strided_slice %0 {offsets = [2, 0], sizes = [1, 256], strides = [1, 1]} : vector<9x256xf32> to vector<1x256xf32>
    %58 = vector.broadcast %57 : vector<1x256xf32> to vector<8x256xf32>
    %59 = arith.mulf %56, %58 : vector<8x256xf32>
    %c1_i32_17 = arith.constant 1 : i32
    %60 = tpu.dynamic_rotate %47 by %c1_i32_17 dim 1 : vector<8x256xf32>, i32 -> vector<8x256xf32>
    %61 = vector.extract_strided_slice %0 {offsets = [3, 0], sizes = [1, 256], strides = [1, 1]} : vector<9x256xf32> to vector<1x256xf32>
    %62 = vector.broadcast %61 : vector<1x256xf32> to vector<8x256xf32>
    %63 = arith.mulf %60, %62 : vector<8x256xf32>
    %c255_i32_18 = arith.constant 255 : i32
    %64 = tpu.dynamic_rotate %47 by %c255_i32_18 dim 1 : vector<8x256xf32>, i32 -> vector<8x256xf32>
    %65 = vector.extract_strided_slice %0 {offsets = [5, 0], sizes = [1, 256], strides = [1, 1]} : vector<9x256xf32> to vector<1x256xf32>
    %66 = vector.broadcast %65 : vector<1x256xf32> to vector<8x256xf32>
    %67 = arith.mulf %64, %66 : vector<8x256xf32>
    %c241_i32_19 = arith.constant 241 : i32
    %68 = tpu.dynamic_rotate %47 by %c241_i32_19 dim 1 : vector<8x256xf32>, i32 -> vector<8x256xf32>
    %69 = vector.extract_strided_slice %0 {offsets = [6, 0], sizes = [1, 256], strides = [1, 1]} : vector<9x256xf32> to vector<1x256xf32>
    %70 = vector.broadcast %69 : vector<1x256xf32> to vector<8x256xf32>
    %71 = arith.mulf %68, %70 : vector<8x256xf32>
    %c240_i32_20 = arith.constant 240 : i32
    %72 = tpu.dynamic_rotate %47 by %c240_i32_20 dim 1 : vector<8x256xf32>, i32 -> vector<8x256xf32>
    %73 = vector.extract_strided_slice %0 {offsets = [7, 0], sizes = [1, 256], strides = [1, 1]} : vector<9x256xf32> to vector<1x256xf32>
    %74 = vector.broadcast %73 : vector<1x256xf32> to vector<8x256xf32>
    %75 = arith.mulf %72, %74 : vector<8x256xf32>
    %c239_i32_21 = arith.constant 239 : i32
    %76 = tpu.dynamic_rotate %47 by %c239_i32_21 dim 1 : vector<8x256xf32>, i32 -> vector<8x256xf32>
    %77 = vector.extract_strided_slice %0 {offsets = [8, 0], sizes = [1, 256], strides = [1, 1]} : vector<9x256xf32> to vector<1x256xf32>
    %78 = vector.broadcast %77 : vector<1x256xf32> to vector<8x256xf32>
    %79 = arith.mulf %76, %78 : vector<8x256xf32>
    %80 = tpu.concatenate %51, %55, %59, %63, %47, %67, %71, %75, %79 in 0 : vector<8x256xf32>, vector<8x256xf32>, vector<8x256xf32>, vector<8x256xf32>, vector<8x256xf32>, vector<8x256xf32>, vector<8x256xf32>, vector<8x256xf32>, vector<8x256xf32> -> vector<72x256xf32>
    %cst_22 = arith.constant dense<0.000000e+00> : vector<8x256xf32>
    %81 = tpu.matmul %3, %80, %cst_22 {dimension_numbers = #tpu.dot_dimension_numbers<[1], [0], [0], [1], [0, 0, 1, 1], [], []>} : vector<8x72xf32>, vector<72x256xf32>, vector<8x256xf32> -> vector<8x256xf32>
    %82 = vector.broadcast %4 : vector<8x1xf32> to vector<8x256xf32>
    %83 = arith.addf %81, %82 : vector<8x256xf32>
    %cst_23 = arith.constant 0.000000e+00 : f32
    %84 = vector.broadcast %cst_23 : f32 to vector<8x256xf32>
    %85 = arith.cmpf oge, %83, %84 : vector<8x256xf32>
    %cst_24 = arith.constant 2.000000e-01 : f32
    %86 = vector.broadcast %cst_24 : f32 to vector<8x256xf32>
    %87 = arith.mulf %86, %83 : vector<8x256xf32>
    %88 = arith.select %85, %83, %87 : vector<8x256xi1>, vector<8x256xf32>
    %c0_25 = arith.constant 0 : index
    %c0_26 = arith.constant 0 : index
    %c0_27 = arith.constant 0 : index
    %89 = vector.load %arg7[%c0_25, %c0_26, %c0_27] : memref<1x8x256xf32, #tpu.memory_space<vmem>>, vector<1x8x256xf32>
    %90 = vector.shape_cast %89 : vector<1x8x256xf32> to vector<8x256xf32>
    %91 = vector.shape_cast %88 : vector<8x256xf32> to vector<1x8x256xf32>
    tpu.vector_store %arg7[%c0_25, %c0_26, %c0_27], %91 {strides = array<i32>} : memref<1x8x256xf32, #tpu.memory_space<vmem>>, vector<1x8x256xf32>,
    return
  }
  func.func @transform_0(%arg0: i32) -> (i32, i32, i32) {
    %c0_i32 = arith.constant 0 : i32
    %c0_i32_0 = arith.constant 0 : i32
    %c0_i32_1 = arith.constant 0 : i32
    return %arg0, %c0_i32, %c0_i32_0 : i32, i32, i32
  }
  func.func @transform_1(%arg0: i32) -> (i32, i32) {
    %c0_i32 = arith.constant 0 : i32
    %c0_i32_0 = arith.constant 0 : i32
    %c0_i32_1 = arith.constant 0 : i32
    return %c0_i32, %c0_i32_0 : i32, i32
  }
  func.func @transform_2(%arg0: i32) -> (i32, i32) {
    %c0_i32 = arith.constant 0 : i32
    %c0_i32_0 = arith.constant 0 : i32
    %c0_i32_1 = arith.constant 0 : i32
    return %c0_i32, %c0_i32_0 : i32, i32
  }
  func.func @transform_3(%arg0: i32) -> (i32, i32) {
    %c0_i32 = arith.constant 0 : i32
    %c0_i32_0 = arith.constant 0 : i32
    %c0_i32_1 = arith.constant 0 : i32
    return %c0_i32, %c0_i32_0 : i32, i32
  }
  func.func @transform_4(%arg0: i32) -> (i32, i32) {
    %c0_i32 = arith.constant 0 : i32
    %c0_i32_0 = arith.constant 0 : i32
    %c0_i32_1 = arith.constant 0 : i32
    return %c0_i32, %c0_i32_0 : i32, i32
  }
  func.func @transform_5(%arg0: i32) -> (i32, i32) {
    %c0_i32 = arith.constant 0 : i32
    %c0_i32_0 = arith.constant 0 : i32
    %c0_i32_1 = arith.constant 0 : i32
    return %c0_i32, %c0_i32_0 : i32, i32
  }
  func.func @transform_6(%arg0: i32) -> (i32, i32, i32) {
    %c0_i32 = arith.constant 0 : i32
    %c0_i32_0 = arith.constant 0 : i32
    %c0_i32_1 = arith.constant 0 : i32
    return %arg0, %c0_i32, %c0_i32_0 : i32, i32, i32
  }
}

module attributes {stable_mosaic.version = 11 : i64} {
  func.func @_fused_conv_layer_kernel(%arg0: i32, %arg1: memref<1x4x256xf32, #tpu.memory_space<vmem>>, %arg2: memref<8x36xf32, #tpu.memory_space<vmem>>, %arg3: memref<8x1xf32, #tpu.memory_space<vmem>>, %arg4: memref<8x72xf32, #tpu.memory_space<vmem>>, %arg5: memref<8x1xf32, #tpu.memory_space<vmem>>, %arg6: memref<9x256xf32, #tpu.memory_space<vmem>>, %arg7: memref<1x8x256xf32, #tpu.memory_space<vmem>>) attributes {dimension_semantics = [#tpu.dimension_semantics<parallel>], iteration_bounds = array<i64: 2>, scalar_prefetch = 0 : i64, scratch_operands = 0 : i64, tpu.core_type = #tpu.core_type<tc>, window_params = [{transform_indices = @transform_0, window_bounds = array<i64: 1, 4, 256>}, {pipeline_mode = #tpu.pipeline_mode<synchronous>, transform_indices = @transform_1, window_bounds = array<i64: 8, 36>}, {pipeline_mode = #tpu.pipeline_mode<synchronous>, transform_indices = @transform_2, window_bounds = array<i64: 8, 1>}, {pipeline_mode = #tpu.pipeline_mode<synchronous>, transform_indices = @transform_3, window_bounds = array<i64: 8, 72>}, {pipeline_mode = #tpu.pipeline_mode<synchronous>, transform_indices = @transform_4, window_bounds = array<i64: 8, 1>}, {pipeline_mode = #tpu.pipeline_mode<synchronous>, transform_indices = @transform_5, window_bounds = array<i64: 9, 256>}, {transform_indices = @transform_6, window_bounds = array<i64: 1, 8, 256>}]} {
    %c0 = arith.constant 0 : index
    %c0_0 = arith.constant 0 : index
    %0 = vector.load %arg6[%c0, %c0_0] : memref<9x256xf32, #tpu.memory_space<vmem>>, vector<9x256xf32>
    %c0_1 = arith.constant 0 : index
    %c0_2 = arith.constant 0 : index
    %1 = vector.load %arg2[%c0_1, %c0_2] : memref<8x36xf32, #tpu.memory_space<vmem>>, vector<8x36xf32>
    %c0_3 = arith.constant 0 : index
    %c0_4 = arith.constant 0 : index
    %2 = vector.load %arg3[%c0_3, %c0_4] : memref<8x1xf32, #tpu.memory_space<vmem>>, vector<8x1xf32>
    %c0_5 = arith.constant 0 : index
    %c0_6 = arith.constant 0 : index
    %3 = vector.load %arg4[%c0_5, %c0_6] : memref<8x72xf32, #tpu.memory_space<vmem>>, vector<8x72xf32>
    %c0_7 = arith.constant 0 : index
    %c0_8 = arith.constant 0 : index
    %4 = vector.load %arg5[%c0_7, %c0_8] : memref<8x1xf32, #tpu.memory_space<vmem>>, vector<8x1xf32>
    %c0_9 = arith.constant 0 : index
    %c0_10 = arith.constant 0 : index
    %c0_11 = arith.constant 0 : index
    %5 = vector.load %arg1[%c0_9, %c0_10, %c0_11] : memref<1x4x256xf32, #tpu.memory_space<vmem>>, vector<1x4x256xf32>
    %6 = vector.shape_cast %5 : vector<1x4x256xf32> to vector<4x256xf32>
    %7 = vector.extract_strided_slice %6 {offsets = [0, 239], sizes = [4, 17], strides = [1, 1]} : vector<4x256xf32> to vector<4x17xf32>
    %8 = vector.extract_strided_slice %6 {offsets = [0, 0], sizes = [4, 239], strides = [1, 1]} : vector<4x256xf32> to vector<4x239xf32>
    %9 = tpu.concatenate %7, %8 in 1 : vector<4x17xf32>, vector<4x239xf32> -> vector<4x256xf32>
    %10 = vector.extract_strided_slice %0 {offsets = [0, 0], sizes = [1, 256], strides = [1, 1]} : vector<9x256xf32> to vector<1x256xf32>
    %11 = vector.broadcast %10 : vector<1x256xf32> to vector<4x256xf32>
    %12 = arith.mulf %9, %11 : vector<4x256xf32>
    %13 = vector.extract_strided_slice %6 {offsets = [0, 240], sizes = [4, 16], strides = [1, 1]} : vector<4x256xf32> to vector<4x16xf32>
    %14 = vector.extract_strided_slice %6 {offsets = [0, 0], sizes = [4, 240], strides = [1, 1]} : vector<4x256xf32> to vector<4x240xf32>
    %15 = tpu.concatenate %13, %14 in 1 : vector<4x16xf32>, vector<4x240xf32> -> vector<4x256xf32>
    %16 = vector.extract_strided_slice %0 {offsets = [1, 0], sizes = [1, 256], strides = [1, 1]} : vector<9x256xf32> to vector<1x256xf32>
    %17 = vector.broadcast %16 : vector<1x256xf32> to vector<4x256xf32>
    %18 = arith.mulf %15, %17 : vector<4x256xf32>
    %19 = vector.extract_strided_slice %6 {offsets = [0, 241], sizes = [4, 15], strides = [1, 1]} : vector<4x256xf32> to vector<4x15xf32>
    %20 = vector.extract_strided_slice %6 {offsets = [0, 0], sizes = [4, 241], strides = [1, 1]} : vector<4x256xf32> to vector<4x241xf32>
    %21 = tpu.concatenate %19, %20 in 1 : vector<4x15xf32>, vector<4x241xf32> -> vector<4x256xf32>
    %22 = vector.extract_strided_slice %0 {offsets = [2, 0], sizes = [1, 256], strides = [1, 1]} : vector<9x256xf32> to vector<1x256xf32>
    %23 = vector.broadcast %22 : vector<1x256xf32> to vector<4x256xf32>
    %24 = arith.mulf %21, %23 : vector<4x256xf32>
    %25 = vector.extract_strided_slice %6 {offsets = [0, 255], sizes = [4, 1], strides = [1, 1]} : vector<4x256xf32> to vector<4x1xf32>
    %26 = vector.extract_strided_slice %6 {offsets = [0, 0], sizes = [4, 255], strides = [1, 1]} : vector<4x256xf32> to vector<4x255xf32>
    %27 = tpu.concatenate %25, %26 in 1 : vector<4x1xf32>, vector<4x255xf32> -> vector<4x256xf32>
    %28 = vector.extract_strided_slice %0 {offsets = [3, 0], sizes = [1, 256], strides = [1, 1]} : vector<9x256xf32> to vector<1x256xf32>
    %29 = vector.broadcast %28 : vector<1x256xf32> to vector<4x256xf32>
    %30 = arith.mulf %27, %29 : vector<4x256xf32>
    %31 = vector.extract_strided_slice %6 {offsets = [0, 1], sizes = [4, 255], strides = [1, 1]} : vector<4x256xf32> to vector<4x255xf32>
    %32 = vector.extract_strided_slice %6 {offsets = [0, 0], sizes = [4, 1], strides = [1, 1]} : vector<4x256xf32> to vector<4x1xf32>
    %33 = tpu.concatenate %31, %32 in 1 : vector<4x255xf32>, vector<4x1xf32> -> vector<4x256xf32>
    %34 = vector.extract_strided_slice %0 {offsets = [5, 0], sizes = [1, 256], strides = [1, 1]} : vector<9x256xf32> to vector<1x256xf32>
    %35 = vector.broadcast %34 : vector<1x256xf32> to vector<4x256xf32>
    %36 = arith.mulf %33, %35 : vector<4x256xf32>
    %37 = vector.extract_strided_slice %6 {offsets = [0, 15], sizes = [4, 241], strides = [1, 1]} : vector<4x256xf32> to vector<4x241xf32>
    %38 = vector.extract_strided_slice %6 {offsets = [0, 0], sizes = [4, 15], strides = [1, 1]} : vector<4x256xf32> to vector<4x15xf32>
    %39 = tpu.concatenate %37, %38 in 1 : vector<4x241xf32>, vector<4x15xf32> -> vector<4x256xf32>
    %40 = vector.extract_strided_slice %0 {offsets = [6, 0], sizes = [1, 256], strides = [1, 1]} : vector<9x256xf32> to vector<1x256xf32>
    %41 = vector.broadcast %40 : vector<1x256xf32> to vector<4x256xf32>
    %42 = arith.mulf %39, %41 : vector<4x256xf32>
    %43 = vector.extract_strided_slice %6 {offsets = [0, 16], sizes = [4, 240], strides = [1, 1]} : vector<4x256xf32> to vector<4x240xf32>
    %44 = vector.extract_strided_slice %6 {offsets = [0, 0], sizes = [4, 16], strides = [1, 1]} : vector<4x256xf32> to vector<4x16xf32>
    %45 = tpu.concatenate %43, %44 in 1 : vector<4x240xf32>, vector<4x16xf32> -> vector<4x256xf32>
    %46 = vector.extract_strided_slice %0 {offsets = [7, 0], sizes = [1, 256], strides = [1, 1]} : vector<9x256xf32> to vector<1x256xf32>
    %47 = vector.broadcast %46 : vector<1x256xf32> to vector<4x256xf32>
    %48 = arith.mulf %45, %47 : vector<4x256xf32>
    %49 = vector.extract_strided_slice %6 {offsets = [0, 17], sizes = [4, 239], strides = [1, 1]} : vector<4x256xf32> to vector<4x239xf32>
    %50 = vector.extract_strided_slice %6 {offsets = [0, 0], sizes = [4, 17], strides = [1, 1]} : vector<4x256xf32> to vector<4x17xf32>
    %51 = tpu.concatenate %49, %50 in 1 : vector<4x239xf32>, vector<4x17xf32> -> vector<4x256xf32>
    %52 = vector.extract_strided_slice %0 {offsets = [8, 0], sizes = [1, 256], strides = [1, 1]} : vector<9x256xf32> to vector<1x256xf32>
    %53 = vector.broadcast %52 : vector<1x256xf32> to vector<4x256xf32>
    %54 = arith.mulf %51, %53 : vector<4x256xf32>
    %55 = tpu.concatenate %12, %18, %24, %30, %6, %36, %42, %48, %54 in 0 : vector<4x256xf32>, vector<4x256xf32>, vector<4x256xf32>, vector<4x256xf32>, vector<4x256xf32>, vector<4x256xf32>, vector<4x256xf32>, vector<4x256xf32>, vector<4x256xf32> -> vector<36x256xf32>
    %cst = arith.constant dense<0.000000e+00> : vector<8x256xf32>
    %56 = tpu.matmul %1, %55, %cst {dimension_numbers = #tpu.dot_dimension_numbers<[1], [0], [0], [1], [0, 0, 1, 1], [], []>} : vector<8x36xf32>, vector<36x256xf32>, vector<8x256xf32> -> vector<8x256xf32>
    %57 = vector.broadcast %2 : vector<8x1xf32> to vector<8x256xf32>
    %58 = arith.addf %56, %57 : vector<8x256xf32>
    %cst_12 = arith.constant 0.000000e+00 : f32
    %59 = vector.broadcast %cst_12 : f32 to vector<8x256xf32>
    %60 = arith.cmpf oge, %58, %59 : vector<8x256xf32>
    %cst_13 = arith.constant 2.000000e-01 : f32
    %61 = vector.broadcast %cst_13 : f32 to vector<8x256xf32>
    %62 = arith.mulf %61, %58 : vector<8x256xf32>
    %63 = arith.select %60, %58, %62 : vector<8x256xi1>, vector<8x256xf32>
    %64 = vector.extract_strided_slice %63 {offsets = [0, 239], sizes = [8, 17], strides = [1, 1]} : vector<8x256xf32> to vector<8x17xf32>
    %65 = vector.extract_strided_slice %63 {offsets = [0, 0], sizes = [8, 239], strides = [1, 1]} : vector<8x256xf32> to vector<8x239xf32>
    %66 = tpu.concatenate %64, %65 in 1 : vector<8x17xf32>, vector<8x239xf32> -> vector<8x256xf32>
    %67 = vector.extract_strided_slice %0 {offsets = [0, 0], sizes = [1, 256], strides = [1, 1]} : vector<9x256xf32> to vector<1x256xf32>
    %68 = vector.broadcast %67 : vector<1x256xf32> to vector<8x256xf32>
    %69 = arith.mulf %66, %68 : vector<8x256xf32>
    %70 = vector.extract_strided_slice %63 {offsets = [0, 240], sizes = [8, 16], strides = [1, 1]} : vector<8x256xf32> to vector<8x16xf32>
    %71 = vector.extract_strided_slice %63 {offsets = [0, 0], sizes = [8, 240], strides = [1, 1]} : vector<8x256xf32> to vector<8x240xf32>
    %72 = tpu.concatenate %70, %71 in 1 : vector<8x16xf32>, vector<8x240xf32> -> vector<8x256xf32>
    %73 = vector.extract_strided_slice %0 {offsets = [1, 0], sizes = [1, 256], strides = [1, 1]} : vector<9x256xf32> to vector<1x256xf32>
    %74 = vector.broadcast %73 : vector<1x256xf32> to vector<8x256xf32>
    %75 = arith.mulf %72, %74 : vector<8x256xf32>
    %76 = vector.extract_strided_slice %63 {offsets = [0, 241], sizes = [8, 15], strides = [1, 1]} : vector<8x256xf32> to vector<8x15xf32>
    %77 = vector.extract_strided_slice %63 {offsets = [0, 0], sizes = [8, 241], strides = [1, 1]} : vector<8x256xf32> to vector<8x241xf32>
    %78 = tpu.concatenate %76, %77 in 1 : vector<8x15xf32>, vector<8x241xf32> -> vector<8x256xf32>
    %79 = vector.extract_strided_slice %0 {offsets = [2, 0], sizes = [1, 256], strides = [1, 1]} : vector<9x256xf32> to vector<1x256xf32>
    %80 = vector.broadcast %79 : vector<1x256xf32> to vector<8x256xf32>
    %81 = arith.mulf %78, %80 : vector<8x256xf32>
    %82 = vector.extract_strided_slice %63 {offsets = [0, 255], sizes = [8, 1], strides = [1, 1]} : vector<8x256xf32> to vector<8x1xf32>
    %83 = vector.extract_strided_slice %63 {offsets = [0, 0], sizes = [8, 255], strides = [1, 1]} : vector<8x256xf32> to vector<8x255xf32>
    %84 = tpu.concatenate %82, %83 in 1 : vector<8x1xf32>, vector<8x255xf32> -> vector<8x256xf32>
    %85 = vector.extract_strided_slice %0 {offsets = [3, 0], sizes = [1, 256], strides = [1, 1]} : vector<9x256xf32> to vector<1x256xf32>
    %86 = vector.broadcast %85 : vector<1x256xf32> to vector<8x256xf32>
    %87 = arith.mulf %84, %86 : vector<8x256xf32>
    %88 = vector.extract_strided_slice %63 {offsets = [0, 1], sizes = [8, 255], strides = [1, 1]} : vector<8x256xf32> to vector<8x255xf32>
    %89 = vector.extract_strided_slice %63 {offsets = [0, 0], sizes = [8, 1], strides = [1, 1]} : vector<8x256xf32> to vector<8x1xf32>
    %90 = tpu.concatenate %88, %89 in 1 : vector<8x255xf32>, vector<8x1xf32> -> vector<8x256xf32>
    %91 = vector.extract_strided_slice %0 {offsets = [5, 0], sizes = [1, 256], strides = [1, 1]} : vector<9x256xf32> to vector<1x256xf32>
    %92 = vector.broadcast %91 : vector<1x256xf32> to vector<8x256xf32>
    %93 = arith.mulf %90, %92 : vector<8x256xf32>
    %94 = vector.extract_strided_slice %63 {offsets = [0, 15], sizes = [8, 241], strides = [1, 1]} : vector<8x256xf32> to vector<8x241xf32>
    %95 = vector.extract_strided_slice %63 {offsets = [0, 0], sizes = [8, 15], strides = [1, 1]} : vector<8x256xf32> to vector<8x15xf32>
    %96 = tpu.concatenate %94, %95 in 1 : vector<8x241xf32>, vector<8x15xf32> -> vector<8x256xf32>
    %97 = vector.extract_strided_slice %0 {offsets = [6, 0], sizes = [1, 256], strides = [1, 1]} : vector<9x256xf32> to vector<1x256xf32>
    %98 = vector.broadcast %97 : vector<1x256xf32> to vector<8x256xf32>
    %99 = arith.mulf %96, %98 : vector<8x256xf32>
    %100 = vector.extract_strided_slice %63 {offsets = [0, 16], sizes = [8, 240], strides = [1, 1]} : vector<8x256xf32> to vector<8x240xf32>
    %101 = vector.extract_strided_slice %63 {offsets = [0, 0], sizes = [8, 16], strides = [1, 1]} : vector<8x256xf32> to vector<8x16xf32>
    %102 = tpu.concatenate %100, %101 in 1 : vector<8x240xf32>, vector<8x16xf32> -> vector<8x256xf32>
    %103 = vector.extract_strided_slice %0 {offsets = [7, 0], sizes = [1, 256], strides = [1, 1]} : vector<9x256xf32> to vector<1x256xf32>
    %104 = vector.broadcast %103 : vector<1x256xf32> to vector<8x256xf32>
    %105 = arith.mulf %102, %104 : vector<8x256xf32>
    %106 = vector.extract_strided_slice %63 {offsets = [0, 17], sizes = [8, 239], strides = [1, 1]} : vector<8x256xf32> to vector<8x239xf32>
    %107 = vector.extract_strided_slice %63 {offsets = [0, 0], sizes = [8, 17], strides = [1, 1]} : vector<8x256xf32> to vector<8x17xf32>
    %108 = tpu.concatenate %106, %107 in 1 : vector<8x239xf32>, vector<8x17xf32> -> vector<8x256xf32>
    %109 = vector.extract_strided_slice %0 {offsets = [8, 0], sizes = [1, 256], strides = [1, 1]} : vector<9x256xf32> to vector<1x256xf32>
    %110 = vector.broadcast %109 : vector<1x256xf32> to vector<8x256xf32>
    %111 = arith.mulf %108, %110 : vector<8x256xf32>
    %112 = tpu.concatenate %69, %75, %81, %87, %63, %93, %99, %105, %111 in 0 : vector<8x256xf32>, vector<8x256xf32>, vector<8x256xf32>, vector<8x256xf32>, vector<8x256xf32>, vector<8x256xf32>, vector<8x256xf32>, vector<8x256xf32>, vector<8x256xf32> -> vector<72x256xf32>
    %cst_14 = arith.constant dense<0.000000e+00> : vector<8x256xf32>
    %113 = tpu.matmul %3, %112, %cst_14 {dimension_numbers = #tpu.dot_dimension_numbers<[1], [0], [0], [1], [0, 0, 1, 1], [], []>} : vector<8x72xf32>, vector<72x256xf32>, vector<8x256xf32> -> vector<8x256xf32>
    %114 = vector.broadcast %4 : vector<8x1xf32> to vector<8x256xf32>
    %115 = arith.addf %113, %114 : vector<8x256xf32>
    %cst_15 = arith.constant 0.000000e+00 : f32
    %116 = vector.broadcast %cst_15 : f32 to vector<8x256xf32>
    %117 = arith.cmpf oge, %115, %116 : vector<8x256xf32>
    %cst_16 = arith.constant 2.000000e-01 : f32
    %118 = vector.broadcast %cst_16 : f32 to vector<8x256xf32>
    %119 = arith.mulf %118, %115 : vector<8x256xf32>
    %120 = arith.select %117, %115, %119 : vector<8x256xi1>, vector<8x256xf32>
    %c0_17 = arith.constant 0 : index
    %c0_18 = arith.constant 0 : index
    %c0_19 = arith.constant 0 : index
    %121 = vector.load %arg7[%c0_17, %c0_18, %c0_19] : memref<1x8x256xf32, #tpu.memory_space<vmem>>, vector<1x8x256xf32>
    %122 = vector.shape_cast %121 : vector<1x8x256xf32> to vector<8x256xf32>
    %123 = vector.shape_cast %120 : vector<8x256xf32> to vector<1x8x256xf32>
    tpu.vector_store %arg7[%c0_17, %c0_18, %c0_19], %123 {strides = array<i32>} : memref<1x8x256xf32, #tpu.memory_space<vmem>>, vector<1x8x256xf32>,
    return
  }
  func.func @transform_0(%arg0: i32) -> (i32, i32, i32) {
    %c0_i32 = arith.constant 0 : i32
    %c0_i32_0 = arith.constant 0 : i32
    %c0_i32_1 = arith.constant 0 : i32
    return %arg0, %c0_i32, %c0_i32_0 : i32, i32, i32
  }
  func.func @transform_1(%arg0: i32) -> (i32, i32) {
    %c0_i32 = arith.constant 0 : i32
    %c0_i32_0 = arith.constant 0 : i32
    %c0_i32_1 = arith.constant 0 : i32
    return %c0_i32, %c0_i32_0 : i32, i32
  }
  func.func @transform_2(%arg0: i32) -> (i32, i32) {
    %c0_i32 = arith.constant 0 : i32
    %c0_i32_0 = arith.constant 0 : i32
    %c0_i32_1 = arith.constant 0 : i32
    return %c0_i32, %c0_i32_0 : i32, i32
  }
  func.func @transform_3(%arg0: i32) -> (i32, i32) {
    %c0_i32 = arith.constant 0 : i32
    %c0_i32_0 = arith.constant 0 : i32
    %c0_i32_1 = arith.constant 0 : i32
    return %c0_i32, %c0_i32_0 : i32, i32
  }
  func.func @transform_4(%arg0: i32) -> (i32, i32) {
    %c0_i32 = arith.constant 0 : i32
    %c0_i32_0 = arith.constant 0 : i32
    %c0_i32_1 = arith.constant 0 : i32
    return %c0_i32, %c0_i32_0 : i32, i32
  }
  func.func @transform_5(%arg0: i32) -> (i32, i32) {
    %c0_i32 = arith.constant 0 : i32
    %c0_i32_0 = arith.constant 0 : i32
    %c0_i32_1 = arith.constant 0 : i32
    return %c0_i32, %c0_i32_0 : i32, i32
  }
  func.func @transform_6(%arg0: i32) -> (i32, i32, i32) {
    %c0_i32 = arith.constant 0 : i32
    %c0_i32_0 = arith.constant 0 : i32
    %c0_i32_1 = arith.constant 0 : i32
    return %arg0, %c0_i32, %c0_i32_0 : i32, i32, i32
  }
}

</mosaic_0001>

<llo_original>
// kernel: conv_layer_forward.1
$region0: #{conv_layer_forward.1}
  #allocation0 [shape = 'u32[]', space=smem, size = 0x4, offset = 0x4, fixed_abs, tag = 'smem constant byte address 0x4 - core index']
  #allocation1 [shape = 'u32[144,128]{1,0:T(1,128)}', space=vmem, size = 0x12000, scoped, tag = 'internal scratch']
  %s0 = inlined_call_operand.vmem [shape: f32[2,4,256], index: 0, kind: input, shape index: {}]
  %s1 = inlined_call_operand.vmem [shape: f32[8,36], index: 1, kind: input, shape index: {}]
  %s2 = inlined_call_operand.vmem [shape: f32[8,1], index: 2, kind: input, shape index: {}]
  %s3 = inlined_call_operand.vmem [shape: f32[8,72], index: 3, kind: input, shape index: {}]
  %s4 = inlined_call_operand.vmem [shape: f32[8,1], index: 4, kind: input, shape index: {}]
  %s5 = inlined_call_operand.vmem [shape: f32[9,256], index: 5, kind: input, shape index: {}]
  %s6 = inlined_call_operand.vmem [shape: f32[2,8,256], index: 6, kind: output, shape index: {}]
  %s7 = sld [smem:[#allocation0]]
  $region57: #{conv_layer_forward.1} parent=0
    _
  %s9 = ssub.s32 1, %s7
  %s10 = scalar_select 0, %s9, %s7
  loop: start=0, step=1, limit=4
  $region2: #{conv_layer_forward.1} parent=0 // loop_pre_header
    _
  $region3: #{conv_layer_forward.1} parent=0 // loop_header
    %s12 = sphi 0, %s16
    %p13 = scmp.ge.s32.totalorder %s12, 4
    %s22 = sphi 0, %s24
    %s25 = sphi 0, %s22
    %s26 = sphi 0, %s25
    %s42 = sphi 0, %s26
    %s46 = sphi 0, %s46
    %s48 = sphi 0, %s46
    %s49 = sphi 0, %s48
    %s63 = sphi 0, %s49
    %s67 = sphi 0, %s67
    %s69 = sphi 0, %s67
    %s70 = sphi 0, %s69
    %s84 = sphi 0, %s70
    %s88 = sphi 0, %s88
    %s90 = sphi 0, %s88
    %s91 = sphi 0, %s90
    %s105 = sphi 0, %s91
    %s109 = sphi 0, %s109
    %s111 = sphi 0, %s109
    %s112 = sphi 0, %s111
    %s126 = sphi 0, %s112
    %s130 = sphi 0, %s130
    %s132 = sphi 0, %s130
    %s133 = sphi 0, %s132
    %s147 = sphi 0, %s133
    %s153 = sphi 0, %s155
    %s156 = sphi 0, %s153
    %s157 = sphi 0, %s156
    %s173 = sphi 0, %s157
  $region4: #{conv_layer_forward.1} parent=0 // loop_header_branch
    %15 = sbr.rel (%p13) target = $region8
  $region5: #{conv_layer_forward.1} parent=0 // loop_body
    %s17 = ssub.s32 %s12, 1
    %s18 = ssub.s32 %s12, 2
    %s19 = sadd.s32 %s12, 1
    %s20 = ssub.s32 %s12, %s19
    %p21 = scmp.eq.s32.totalorder %s20, 0
    %s23 = sadd.s32 %s22, 1
    %s24 = scalar_select %p21, %s22, %s23
    %p27 = pneg %p21
    %p28 = scmp.eq.s32.totalorder %s12, 1
    %p29 = por %p27, %p28
    %p30 = scmp.ne.s32.totalorder %s22, %s25
    %p31 = scmp.eq.s32.totalorder %s12, 0
    %p32 = por %p30, %p31
    %p33 = scmp.ne.s32.totalorder %s22, %s25
    %p34 = scmp.eq.s32.totalorder %s17, 1
    %p35 = por %p33, %p34
    %p36 = scmp.ne.s32.totalorder %s25, %s26
    %p37 = scmp.eq.s32.totalorder %s17, 0
    %p38 = por %p36, %p37
    %p39 = scmp.ne.s32.totalorder %s25, %s26
    %p40 = scmp.eq.s32.totalorder %s18, 1
    %p41 = por %p39, %p40
    %p43 = scmp.ne.s32.totalorder %s26, %s42
    %p44 = scmp.eq.s32.totalorder %s18, 0
    %p45 = por %p43, %p44
    %s47 = sadd.s32 %s46, 1
    %p50 = scmp.eq.s32.totalorder %s12, 1
    %p51 = scmp.ne.s32.totalorder %s46, %s48
    %p52 = scmp.eq.s32.totalorder %s12, 0
    %p53 = por %p51, %p52
    %p54 = scmp.ne.s32.totalorder %s46, %s48
    %p55 = scmp.eq.s32.totalorder %s17, 1
    %p56 = por %p54, %p55
    %p57 = scmp.ne.s32.totalorder %s48, %s49
    %p58 = scmp.eq.s32.totalorder %s17, 0
    %p59 = por %p57, %p58
    %p60 = scmp.ne.s32.totalorder %s48, %s49
    %p61 = scmp.eq.s32.totalorder %s18, 1
    %p62 = por %p60, %p61
    %p64 = scmp.ne.s32.totalorder %s49, %s63
    %p65 = scmp.eq.s32.totalorder %s18, 0
    %p66 = por %p64, %p65
    %s68 = sadd.s32 %s67, 1
    %p71 = scmp.eq.s32.totalorder %s12, 1
    %p72 = scmp.ne.s32.totalorder %s67, %s69
    %p73 = scmp.eq.s32.totalorder %s12, 0
    %p74 = por %p72, %p73
    %p75 = scmp.ne.s32.totalorder %s67, %s69
    %p76 = scmp.eq.s32.totalorder %s17, 1
    %p77 = por %p75, %p76
    %p78 = scmp.ne.s32.totalorder %s69, %s70
    %p79 = scmp.eq.s32.totalorder %s17, 0
    %p80 = por %p78, %p79
    %p81 = scmp.ne.s32.totalorder %s69, %s70
    %p82 = scmp.eq.s32.totalorder %s18, 1
    %p83 = por %p81, %p82
    %p85 = scmp.ne.s32.totalorder %s70, %s84
    %p86 = scmp.eq.s32.totalorder %s18, 0
    %p87 = por %p85, %p86
    %s89 = sadd.s32 %s88, 1
    %p92 = scmp.eq.s32.totalorder %s12, 1
    %p93 = scmp.ne.s32.totalorder %s88, %s90
    %p94 = scmp.eq.s32.totalorder %s12, 0
    %p95 = por %p93, %p94
    %p96 = scmp.ne.s32.totalorder %s88, %s90
    %p97 = scmp.eq.s32.totalorder %s17, 1
    %p98 = por %p96, %p97
    %p99 = scmp.ne.s32.totalorder %s90, %s91
    %p100 = scmp.eq.s32.totalorder %s17, 0
    %p101 = por %p99, %p100
    %p102 = scmp.ne.s32.totalorder %s90, %s91
    %p103 = scmp.eq.s32.totalorder %s18, 1
    %p104 = por %p102, %p103
    %p106 = scmp.ne.s32.totalorder %s91, %s105
    %p107 = scmp.eq.s32.totalorder %s18, 0
    %p108 = por %p106, %p107
    %s110 = sadd.s32 %s109, 1
    %p113 = scmp.eq.s32.totalorder %s12, 1
    %p114 = scmp.ne.s32.totalorder %s109, %s111
    %p115 = scmp.eq.s32.totalorder %s12, 0
    %p116 = por %p114, %p115
    %p117 = scmp.ne.s32.totalorder %s109, %s111
    %p118 = scmp.eq.s32.totalorder %s17, 1
    %p119 = por %p117, %p118
    %p120 = scmp.ne.s32.totalorder %s111, %s112
    %p121 = scmp.eq.s32.totalorder %s17, 0
    %p122 = por %p120, %p121
    %p123 = scmp.ne.s32.totalorder %s111, %s112
    %p124 = scmp.eq.s32.totalorder %s18, 1
    %p125 = por %p123, %p124
    %p127 = scmp.ne.s32.totalorder %s112, %s126
    %p128 = scmp.eq.s32.totalorder %s18, 0
    %p129 = por %p127, %p128
    %s131 = sadd.s32 %s130, 1
    %p134 = scmp.eq.s32.totalorder %s12, 1
    %p135 = scmp.ne.s32.totalorder %s130, %s132
    %p136 = scmp.eq.s32.totalorder %s12, 0
    %p137 = por %p135, %p136
    %p138 = scmp.ne.s32.totalorder %s130, %s132
    %p139 = scmp.eq.s32.totalorder %s17, 1
    %p140 = por %p138, %p139
    %p141 = scmp.ne.s32.totalorder %s132, %s133
    %p142 = scmp.eq.s32.totalorder %s17, 0
    %p143 = por %p141, %p142
    %p144 = scmp.ne.s32.totalorder %s132, %s133
    %p145 = scmp.eq.s32.totalorder %s18, 1
    %p146 = por %p144, %p145
    %p148 = scmp.ne.s32.totalorder %s133, %s147
    %p149 = scmp.eq.s32.totalorder %s18, 0
    %p150 = por %p148, %p149
    %s151 = ssub.s32 %s12, %s19
    %p152 = scmp.eq.s32.totalorder %s151, 0
    %s154 = sadd.s32 %s153, 1
    %s155 = scalar_select %p152, %s153, %s154
    %p158 = pneg %p152
    %p159 = scmp.eq.s32.totalorder %s12, 1
    %p160 = por %p158, %p159
    %p161 = scmp.ne.s32.totalorder %s153, %s156
    %p162 = scmp.eq.s32.totalorder %s12, 0
    %p163 = por %p161, %p162
    %p164 = scmp.ne.s32.totalorder %s153, %s156
    %p165 = scmp.eq.s32.totalorder %s17, 1
    %p166 = por %p164, %p165
    %p167 = scmp.ne.s32.totalorder %s156, %s157
    %p168 = scmp.eq.s32.totalorder %s17, 0
    %p169 = por %p167, %p168
    %p170 = scmp.ne.s32.totalorder %s156, %s157
    %p171 = scmp.eq.s32.totalorder %s18, 1
    %p172 = por %p170, %p171
    %p174 = scmp.ne.s32.totalorder %s157, %s173
    %p175 = scmp.eq.s32.totalorder %s18, 0
    %p176 = por %p174, %p175
    %p177 = scmp.le.s32.totalorder 1, %s12
    %p178 = scmp.lt.s32.totalorder %s12, 3
    %p179 = pnand %p177, %p178
    %p180 = pneg %p179
    // Predicated region
    $region9: #{conv_layer_forward.1} parent=5 // pred_check
      _
    $region10: #{conv_layer_forward.1} parent=5 // pred_check_branch
      %182 = sbr.rel (%p179) target = $region12
    $region11: #{conv_layer_forward.1} parent=5 // pred_region
      %s183 = ssub.s32 %s12, 1
      // Predicated region
      $region13: #{conv_layer_forward.1} parent=11 // pred_check
        %p184 = pneg %p59
      $region14: #{conv_layer_forward.1} parent=11 // pred_check_branch
        %186 = sbr.rel (%p184) target = $region16
      $region15: #{conv_layer_forward.1} parent=11 // pred_region
        _
      $region16: #{conv_layer_forward.1} parent=11 // pred_fallthru
        _
      // Predicated region
      $region17: #{conv_layer_forward.1} parent=11 // pred_check
        %p187 = pneg %p80
      $region18: #{conv_layer_forward.1} parent=11 // pred_check_branch
        %189 = sbr.rel (%p187) target = $region20
      $region19: #{conv_layer_forward.1} parent=11 // pred_region
        _
      $region20: #{conv_layer_forward.1} parent=11 // pred_fallthru
        _
      // Predicated region
      $region21: #{conv_layer_forward.1} parent=11 // pred_check
        %p190 = pneg %p101
      $region22: #{conv_layer_forward.1} parent=11 // pred_check_branch
        %192 = sbr.rel (%p190) target = $region24
      $region23: #{conv_layer_forward.1} parent=11 // pred_region
        _
      $region24: #{conv_layer_forward.1} parent=11 // pred_fallthru
        _
      // Predicated region
      $region25: #{conv_layer_forward.1} parent=11 // pred_check
        %p193 = pneg %p122
      $region26: #{conv_layer_forward.1} parent=11 // pred_check_branch
        %195 = sbr.rel (%p193) target = $region28
      $region27: #{conv_layer_forward.1} parent=11 // pred_region
        _
      $region28: #{conv_layer_forward.1} parent=11 // pred_fallthru
        _
      // Predicated region
      $region29: #{conv_layer_forward.1} parent=11 // pred_check
        %p196 = pneg %p143
      $region30: #{conv_layer_forward.1} parent=11 // pred_check_branch
        %198 = sbr.rel (%p196) target = $region32
      $region31: #{conv_layer_forward.1} parent=11 // pred_region
        _
      $region32: #{conv_layer_forward.1} parent=11 // pred_fallthru
        _
    $region12: #{conv_layer_forward.1} parent=5 // pred_fallthru
      _
    %p199 = scmp.lt.s32.totalorder %s12, 2
    // Predicated region
    $region33: #{conv_layer_forward.1} parent=5 // pred_check
      %p200 = pneg %p199
    $region34: #{conv_layer_forward.1} parent=5 // pred_check_branch
      %202 = sbr.rel (%p200) target = $region36
    $region35: #{conv_layer_forward.1} parent=5 // pred_region
      // Predicated region
      $region37: #{conv_layer_forward.1} parent=35 // pred_check
        %p203 = pneg %p32
      $region38: #{conv_layer_forward.1} parent=35 // pred_check_branch
        %205 = sbr.rel (%p203) target = $region40
      $region39: #{conv_layer_forward.1} parent=35 // pred_region
        %p206 = scmp.lt.s32.totalorder %s12, 1
        %s207 = scalar_select %p206, %s12, 1
        %s208 = smul.addr %s207, 2
        %s209 = smul.addr %s208, 4
        %s210 = scalar_lea.vmem %s0, %s209
      $region40: #{conv_layer_forward.1} parent=35 // pred_fallthru
        _
    $region36: #{conv_layer_forward.1} parent=5 // pred_fallthru
      _
    %p211 = scmp.le.s32.totalorder 1, %s12
    %p212 = scmp.lt.s32.totalorder %s12, 3
    %p213 = pnand %p211, %p212
    %p214 = pneg %p213
    // Predicated region
    $region41: #{conv_layer_forward.1} parent=5 // pred_check
      _
    $region42: #{conv_layer_forward.1} parent=5 // pred_check_branch
      %216 = sbr.rel (%p213) target = $region44
    $region43: #{conv_layer_forward.1} parent=5 // pred_region
      %s217 = ssub.s32 %s12, 1
      %p218 = scmp.lt.s32.totalorder %s17, 1
      %s219 = scalar_select %p218, %s17, 1
      %s220 = smul.addr %s219, 2
      %s221 = smul.addr %s220, 4
      %s222 = scalar_lea.vmem %s0, %s221
      %p223 = pneg %p38
      %p224 = pneg %p35
      %p225 = pneg %p59
      %p226 = pneg %p56
      %p227 = pneg %p80
      %p228 = pneg %p77
      %p229 = pneg %p101
      %p230 = pneg %p98
      %p231 = pneg %p122
      %p232 = pneg %p119
      %p233 = pneg %p143
      %p234 = pneg %p140
      %p235 = pneg %p169
      %p236 = pneg %p166
      %p237 = scmp.lt.s32.totalorder %s17, 1
      %s238 = scalar_select %p237, %s17, 1
      %s239 = smul.addr %s238, 2
      %s240 = smul.addr %s239, 8
      %s241 = scalar_lea.vmem %s6, %s240
      %p242 = scmp.lt.s32.totalorder %s17, 1
      %s243 = scalar_select %p242, %s17, 1
      %s244 = smul.addr %s243, 2
      %s245 = smul.addr %s244, 4
      %s246 = scalar_lea.vmem %s0, %s245
      %p247 = scmp.lt.s32.totalorder %s17, 1
      %s248 = scalar_select %p247, %s17, 1
      %s249 = smul.addr %s248, 2
      %s250 = smul.addr %s249, 8
      %s251 = scalar_lea.vmem %s6, %s250
      %v252 = vld [vmem:[%s5] sm:$0xff]
      %v253 = vld [vmem:[%s5 + $0x8] sm:$0xff]
      %v254 = vld [vmem:[%s5 + $0x10] sm:$0x1]
      %v255 = vld [vmem:[%s5 + $0x18] sm:$0x1]
      %v256 = vld [vmem:[%s1] sm:$0xff]
      %v257 = vld [vmem:[%s2] sm:$0xff]
      %v258 = vld [vmem:[%s3] sm:$0xff]
      %v259 = vld [vmem:[%s4] sm:$0xff]
      %v260 = vld [vmem:[%s246] sm:$0xff]
      %v262 = vcombine.high %v260, %v260
      %264 = vrot.lane.b32.xlu0 %v260, 17
      %v265 = vpop.permute.xlu0 %264
      %266 = vrot.lane.b32.xlu0 %v262, 17
      %v267 = vpop.permute.xlu0 %266
      %v268 = vlaneseq
      %v269 = vand.u32 %v268, 127
      %vm270 = vcmp.lt.s32.totalorder %v269, 17
      %v271 = vsel %vm270, %v265, %v267
      %v272 = vsel %vm270, %v267, %v265
      %v273 = vlaneseq
      %v274 = vshrl.u32 %v273, 7
      %v275 = vsub.s32 0, %v274
      %v276 = vrot.slane %v252, %v275
      %v277 = vlaneseq
      %v278 = vshrl.u32 %v277, 7
      %v279 = vsub.s32 0, %v278
      %v280 = vrot.slane %v253, %v279
      %v281 = vmul.f32 %v272, %v276
      %v282 = vmul.f32 %v271, %v280
      %283 = vrot.lane.b32.xlu0 %v260, 16
      %v284 = vpop.permute.xlu0 %283
      %285 = vrot.lane.b32.xlu0 %v262, 16
      %v286 = vpop.permute.xlu0 %285
      %vm287 = vcmp.lt.s32.totalorder %v269, 16
      %v288 = vsel %vm287, %v284, %v286
      %v289 = vsel %vm287, %v286, %v284
      %v290 = vlaneseq
      %v291 = vshrl.u32 %v290, 7
      %v292 = vsub.s32 1, %v291
      %v293 = vrot.slane %v252, %v292
      %v294 = vlaneseq
      %v295 = vshrl.u32 %v294, 7
      %v296 = vsub.s32 1, %v295
      %v297 = vrot.slane %v253, %v296
      %v298 = vmul.f32 %v289, %v293
      %v299 = vmul.f32 %v288, %v297
      %300 = vrot.lane.b32.xlu0 %v260, 15
      %v301 = vpop.permute.xlu0 %300
      %302 = vrot.lane.b32.xlu0 %v262, 15
      %v303 = vpop.permute.xlu0 %302
      %vm304 = vcmp.lt.s32.totalorder %v269, 15
      %v305 = vsel %vm304, %v301, %v303
      %v306 = vsel %vm304, %v303, %v301
      %v307 = vlaneseq
      %v308 = vshrl.u32 %v307, 7
      %v309 = vsub.s32 2, %v308
      %v310 = vrot.slane %v252, %v309
      %v311 = vlaneseq
      %v312 = vshrl.u32 %v311, 7
      %v313 = vsub.s32 2, %v312
      %v314 = vrot.slane %v253, %v313
      %v315 = vmul.f32 %v306, %v310
      %v316 = vmul.f32 %v305, %v314
      %317 = vrot.lane.b32.xlu0 %v260, 1
      %v318 = vpop.permute.xlu0 %317
      %319 = vrot.lane.b32.xlu0 %v262, 1
      %v320 = vpop.permute.xlu0 %319
      %vm321 = vcmp.lt.s32.totalorder %v269, 1
      %v322 = vsel %vm321, %v318, %v320
      %v323 = vsel %vm321, %v320, %v318
      %v324 = vlaneseq
      %v325 = vshrl.u32 %v324, 7
      %v326 = vsub.s32 3, %v325
      %v327 = vrot.slane %v252, %v326
      %v328 = vlaneseq
      %v329 = vshrl.u32 %v328, 7
      %v330 = vsub.s32 3, %v329
      %v331 = vrot.slane %v253, %v330
      %v332 = vmul.f32 %v323, %v327
      %v333 = vmul.f32 %v322, %v331
      %334 = vrot.lane.b32.xlu0 %v260, 127
      %v335 = vpop.permute.xlu0 %334
      %336 = vrot.lane.b32.xlu0 %v262, 127
      %v337 = vpop.permute.xlu0 %336
      %vm338 = vcmp.lt.s32.totalorder %v269, 127
      %v339 = vsel %vm338, %v335, %v337
      %v340 = vsel %vm338, %v337, %v335
      %v341 = vlaneseq
      %v342 = vshrl.u32 %v341, 7
      %v343 = vsub.s32 5, %v342
      %v344 = vrot.slane %v252, %v343
      %v345 = vlaneseq
      %v346 = vshrl.u32 %v345, 7
      %v347 = vsub.s32 5, %v346
      %v348 = vrot.slane %v253, %v347
      %v349 = vmul.f32 %v339, %v344
      %v350 = vmul.f32 %v340, %v348
      %351 = vrot.lane.b32.xlu0 %v260, 113
      %v352 = vpop.permute.xlu0 %351
      %353 = vrot.lane.b32.xlu0 %v262, 113
      %v354 = vpop.permute.xlu0 %353
      %vm355 = vcmp.lt.s32.totalorder %v269, 113
      %v356 = vsel %vm355, %v352, %v354
      %v357 = vsel %vm355, %v354, %v352
      %v358 = vlaneseq
      %v359 = vshrl.u32 %v358, 7
      %v360 = vsub.s32 6, %v359
      %v361 = vrot.slane %v252, %v360
      %v362 = vlaneseq
      %v363 = vshrl.u32 %v362, 7
      %v364 = vsub.s32 6, %v363
      %v365 = vrot.slane %v253, %v364
      %v366 = vmul.f32 %v356, %v361
      %v367 = vmul.f32 %v357, %v365
      %368 = vrot.lane.b32.xlu0 %v260, 112
      %v369 = vpop.permute.xlu0 %368
      %370 = vrot.lane.b32.xlu0 %v262, 112
      %v371 = vpop.permute.xlu0 %370
      %vm372 = vcmp.lt.s32.totalorder %v269, 112
      %v373 = vsel %vm372, %v369, %v371
      %v374 = vsel %vm372, %v371, %v369
      %v375 = vlaneseq
      %v376 = vshrl.u32 %v375, 7
      %v377 = vsub.s32 7, %v376
      %v378 = vrot.slane %v252, %v377
      %v379 = vlaneseq
      %v380 = vshrl.u32 %v379, 7
      %v381 = vsub.s32 7, %v380
      %v382 = vrot.slane %v253, %v381
      %v383 = vmul.f32 %v373, %v378
      %v384 = vmul.f32 %v374, %v382
      %385 = vrot.lane.b32.xlu0 %v260, 111
      %v386 = vpop.permute.xlu0 %385
      %387 = vrot.lane.b32.xlu0 %v262, 111
      %v388 = vpop.permute.xlu0 %387
      %vm389 = vcmp.lt.s32.totalorder %v269, 111
      %v390 = vsel %vm389, %v386, %v388
      %v391 = vsel %vm389, %v388, %v386
      %v392 = vlaneseq
      %v393 = vshrl.u32 %v392, 7
      %v394 = vsub.s32 0, %v393
      %v395 = vrot.slane %v254, %v394
      %v396 = vlaneseq
      %v397 = vshrl.u32 %v396, 7
      %v398 = vsub.s32 0, %v397
      %v399 = vrot.slane %v255, %v398
      %v400 = vmul.f32 %v390, %v395
      %v401 = vmul.f32 %v391, %v399
      %v404 = vrot.slane %v298, 4
      %v405 = vrot.slane %v299, 4
      %v410 = vrot.slane %v332, 4
      %v411 = vrot.slane %v333, 4
      %v416 = vrot.slane %v349, 4
      %v417 = vrot.slane %v350, 4
      %v422 = vrot.slane %v383, 4
      %v423 = vrot.slane %v384, 4
      %vm426 = vcmask 1043456
      %v427 = vsel %vm426, %v281, %v404
      %v428 = vsel %vm426, %v282, %v405
      %v429 = vsel %vm426, %v315, %v410
      %v430 = vsel %vm426, %v316, %v411
      %v431 = vsel %vm426, %v260, %v416
      %v432 = vsel %vm426, %v262, %v417
      %v433 = vsel %vm426, %v366, %v422
      %v434 = vsel %vm426, %v367, %v423
      %436 = vset.pattern.permute.xlu0 0
      %437 = vperm.xlu0 %436, %v257
      %v438 = vpop.permute.xlu0 %437
      %vm440 = vcmask 293888
      %v442 = vsel %vm440, %v256, 0
      %v445 = vsel %vm426, %v400, 0
      %v448 = vsel %vm426, %v401, 0
      %450 = vmatprep.subr.mxu0 0.0
      %451 = vmatpush1.msra.mxu0 0.0
      %452 = vmatprep.subr.mxu0 0.0
      %453 = vmatpush1.msra.mxu0 0.0
      %454 = vmatprep.subr.mxu0 0.0
      %455 = vmatpush1.msra.mxu0 0.0
      %456 = vmatprep.subr.mxu0 0.0
      %457 = vmatpush1.msra.mxu0 0.0
      %458 = vmatprep.subr.mxu0 0.0
      %459 = vmatpush1.msra.mxu0 0.0
      %460 = vmatprep.subr.mxu0 0.0
      %461 = vmatpush1.msra.mxu0 0.0
      %462 = vmatprep.subr.mxu0 0.0
      %463 = vmatpush1.msra.mxu0 0.0
      %464 = vmatprep.subr.mxu0 0.0
      %465 = vmatpush1.msra.mxu0 0.0
      %466 = vmatprep.subr.mxu0 0.0
      %467 = vmatpush1.msra.mxu0 0.0
      %468 = vmatprep.subr.mxu0 0.0
      %469 = vmatpush1.msra.mxu0 0.0
      %470 = vmatprep.subr.mxu0 0.0
      %471 = vmatpush1.msra.mxu0 0.0
      %472 = vmatprep.subr.mxu0 %v448
      %473 = vmatpush1.msra.mxu0 %v445
      %474 = vmatprep.subr.mxu0 %v434
      %475 = vmatpush1.msra.mxu0 %v433
      %476 = vmatprep.subr.mxu0 %v432
      %477 = vmatpush1.msra.mxu0 %v431
      %478 = vmatprep.subr.mxu0 %v430
      %479 = vmatpush1.msra.mxu0 %v429
      %480 = vmatprep.subr.mxu0 %v428
      %481 = vmatpush1.msra.mxu0 %v427
      %482 = vmatprep.subr.mxu0 0.0
      %483 = vmatpush2.msra.mxu0 0.0
      %484 = vmatprep.subr.mxu0 0.0
      %485 = vmatpush2.msra.mxu0 0.0
      %486 = vmatprep.subr.mxu0 0.0
      %487 = vmatpush2.msra.mxu0 0.0
      %488 = vmatprep.subr.mxu0 0.0
      %489 = vmatpush2.msra.mxu0 0.0
      %490 = vmatprep.subr.mxu0 0.0
      %491 = vmatpush2.msra.mxu0 0.0
      %492 = vmatprep.subr.mxu0 0.0
      %493 = vmatpush2.msra.mxu0 0.0
      %494 = vmatprep.subr.mxu0 0.0
      %495 = vmatpush2.msra.mxu0 0.0
      %496 = vmatprep.subr.mxu0 0.0
      %497 = vmatpush2.msra.mxu0 0.0
      %498 = vmatprep.subr.mxu0 0.0
      %499 = vmatpush2.msra.mxu0 0.0
      %500 = vmatprep.subr.mxu0 0.0
      %501 = vmatpush2.msra.mxu0 0.0
      %502 = vmatprep.subr.mxu0 0.0
      %503 = vmatpush2.msra.mxu0 0.0
      %504 = vmatprep.subr.mxu0 0.0
      %505 = vmatpush2.msra.mxu0 0.0
      %506 = vmatprep.subr.mxu0 0.0
      %507 = vmatpush2.msra.mxu0 0.0
      %508 = vmatprep.subr.mxu0 0.0
      %509 = vmatpush2.msra.mxu0 0.0
      %510 = vmatprep.subr.mxu0 0.0
      %511 = vmatpush2.msra.mxu0 0.0
      %512 = vmatprep.subr.mxu0 0.0
      %513 = vmatpush2.msra.mxu0 0.0
      %514 = vmatprep.mubr.f32.mxu0 0.0
      %515 = vmatmul.mubr.f32.gmra.mxu0 %v442
      %v516 = vpop.f32.mrf.mxu0
      %v517 = vadd.f32 %v438, %v516
      %v518 = vpop.f32.mrf.mxu0
      %v519 = vadd.f32 %v438, %v518
      %520 = vdwg.mxu0
      %vm521 = vcmp.ge.f32.partialorder %v517, 0.0
      %vm522 = vcmp.ge.f32.partialorder %v519, 0.0
      %v523 = vmul.f32 %v517, 0.2
      %v524 = vmul.f32 %v519, 0.2
      %v525 = vsel %vm521, %v517, %v523
      %v526 = vsel %vm522, %v519, %v524
      %527 = vrot.lane.b32.xlu0 %v525, 17
      %v528 = vpop.permute.xlu0 %527
      %529 = vrot.lane.b32.xlu0 %v526, 17
      %v530 = vpop.permute.xlu0 %529
      %v531 = vsel %vm270, %v528, %v530
      %v532 = vsel %vm270, %v530, %v528
      %v533 = vmul.f32 %v532, %v276
      %v534 = vmul.f32 %v531, %v280
      %535 = vrot.lane.b32.xlu0 %v525, 16
      %v536 = vpop.permute.xlu0 %535
      %537 = vrot.lane.b32.xlu0 %v526, 16
      %v538 = vpop.permute.xlu0 %537
      %v539 = vsel %vm287, %v536, %v538
      %v540 = vsel %vm287, %v538, %v536
      %v541 = vmul.f32 %v540, %v293
      %v542 = vmul.f32 %v539, %v297
      %543 = vrot.lane.b32.xlu0 %v525, 15
      %v544 = vpop.permute.xlu0 %543
      %545 = vrot.lane.b32.xlu0 %v526, 15
      %v546 = vpop.permute.xlu0 %545
      %v547 = vsel %vm304, %v544, %v546
      %v548 = vsel %vm304, %v546, %v544
      %v549 = vmul.f32 %v548, %v310
      %v550 = vmul.f32 %v547, %v314
      %551 = vrot.lane.b32.xlu0 %v525, 1
      %v552 = vpop.permute.xlu0 %551
      %553 = vrot.lane.b32.xlu0 %v526, 1
      %v554 = vpop.permute.xlu0 %553
      %v555 = vsel %vm321, %v552, %v554
      %v556 = vsel %vm321, %v554, %v552
      %v557 = vmul.f32 %v556, %v327
      %v558 = vmul.f32 %v555, %v331
      %559 = vrot.lane.b32.xlu0 %v525, 127
      %v560 = vpop.permute.xlu0 %559
      %561 = vrot.lane.b32.xlu0 %v526, 127
      %v562 = vpop.permute.xlu0 %561
      %v563 = vsel %vm338, %v560, %v562
      %v564 = vsel %vm338, %v562, %v560
      %v565 = vmul.f32 %v563, %v344
      %v566 = vmul.f32 %v564, %v348
      %567 = vrot.lane.b32.xlu0 %v525, 113
      %v568 = vpop.permute.xlu0 %567
      %569 = vrot.lane.b32.xlu0 %v526, 113
      %v570 = vpop.permute.xlu0 %569
      %v571 = vsel %vm355, %v568, %v570
      %v572 = vsel %vm355, %v570, %v568
      %v573 = vmul.f32 %v571, %v361
      %v574 = vmul.f32 %v572, %v365
      %575 = vrot.lane.b32.xlu0 %v525, 112
      %v576 = vpop.permute.xlu0 %575
      %577 = vrot.lane.b32.xlu0 %v526, 112
      %v578 = vpop.permute.xlu0 %577
      %v579 = vsel %vm372, %v576, %v578
      %v580 = vsel %vm372, %v578, %v576
      %v581 = vmul.f32 %v579, %v378
      %v582 = vmul.f32 %v580, %v382
      %583 = vrot.lane.b32.xlu0 %v525, 111
      %v584 = vpop.permute.xlu0 %583
      %585 = vrot.lane.b32.xlu0 %v526, 111
      %v586 = vpop.permute.xlu0 %585
      %v587 = vsel %vm389, %v584, %v586
      %v588 = vsel %vm389, %v586, %v584
      %v589 = vmul.f32 %v587, %v395
      %v590 = vmul.f32 %v588, %v399
      %592 = vset.pattern.permute.xlu0 0
      %593 = vperm.xlu0 %592, %v259
      %v594 = vpop.permute.xlu0 %593
      %vm596 = vcmask 588800
      %v598 = vsel %vm596, %v258, 0
      %600 = vmatprep.subr.mxu0 0.0
      %601 = vmatpush1.msra.mxu0 0.0
      %602 = vmatprep.subr.mxu0 0.0
      %603 = vmatpush1.msra.mxu0 0.0
      %604 = vmatprep.subr.mxu0 0.0
      %605 = vmatpush1.msra.mxu0 0.0
      %606 = vmatprep.subr.mxu0 0.0
      %607 = vmatpush1.msra.mxu0 0.0
      %608 = vmatprep.subr.mxu0 0.0
      %609 = vmatpush1.msra.mxu0 0.0
      %610 = vmatprep.subr.mxu0 0.0
      %611 = vmatpush1.msra.mxu0 0.0
      %612 = vmatprep.subr.mxu0 0.0
      %613 = vmatpush1.msra.mxu0 0.0
      %614 = vmatprep.subr.mxu0 %v590
      %615 = vmatpush1.msra.mxu0 %v589
      %616 = vmatprep.subr.mxu0 %v582
      %617 = vmatpush1.msra.mxu0 %v581
      %618 = vmatprep.subr.mxu0 %v574
      %619 = vmatpush1.msra.mxu0 %v573
      %620 = vmatprep.subr.mxu0 %v566
      %621 = vmatpush1.msra.mxu0 %v565
      %622 = vmatprep.subr.mxu0 %v526
      %623 = vmatpush1.msra.mxu0 %v525
      %624 = vmatprep.subr.mxu0 %v558
      %625 = vmatpush1.msra.mxu0 %v557
      %626 = vmatprep.subr.mxu0 %v550
      %627 = vmatpush1.msra.mxu0 %v549
      %628 = vmatprep.subr.mxu0 %v542
      %629 = vmatpush1.msra.mxu0 %v541
      %630 = vmatprep.subr.mxu0 %v534
      %631 = vmatpush1.msra.mxu0 %v533
      %632 = vmatprep.subr.mxu0 0.0
      %633 = vmatpush2.msra.mxu0 0.0
      %634 = vmatprep.subr.mxu0 0.0
      %635 = vmatpush2.msra.mxu0 0.0
      %636 = vmatprep.subr.mxu0 0.0
      %637 = vmatpush2.msra.mxu0 0.0
      %638 = vmatprep.subr.mxu0 0.0
      %639 = vmatpush2.msra.mxu0 0.0
      %640 = vmatprep.subr.mxu0 0.0
      %641 = vmatpush2.msra.mxu0 0.0
      %642 = vmatprep.subr.mxu0 0.0
      %643 = vmatpush2.msra.mxu0 0.0
      %644 = vmatprep.subr.mxu0 0.0
      %645 = vmatpush2.msra.mxu0 0.0
      %646 = vmatprep.subr.mxu0 0.0
      %647 = vmatpush2.msra.mxu0 0.0
      %648 = vmatprep.subr.mxu0 0.0
      %649 = vmatpush2.msra.mxu0 0.0
      %650 = vmatprep.subr.mxu0 0.0
      %651 = vmatpush2.msra.mxu0 0.0
      %652 = vmatprep.subr.mxu0 0.0
      %653 = vmatpush2.msra.mxu0 0.0
      %654 = vmatprep.subr.mxu0 0.0
      %655 = vmatpush2.msra.mxu0 0.0
      %656 = vmatprep.subr.mxu0 0.0
      %657 = vmatpush2.msra.mxu0 0.0
      %658 = vmatprep.subr.mxu0 0.0
      %659 = vmatpush2.msra.mxu0 0.0
      %660 = vmatprep.subr.mxu0 0.0
      %661 = vmatpush2.msra.mxu0 0.0
      %662 = vmatprep.subr.mxu0 0.0
      %663 = vmatpush2.msra.mxu0 0.0
      %664 = vmatprep.mubr.f32.mxu0 0.0
      %665 = vmatmul.mubr.f32.gmra.mxu0 %v598
      %v666 = vpop.f32.mrf.mxu0
      %v667 = vadd.f32 %v594, %v666
      %v668 = vpop.f32.mrf.mxu0
      %v669 = vadd.f32 %v594, %v668
      %670 = vdwg.mxu0
      %vm671 = vcmp.ge.f32.partialorder %v667, 0.0
      %vm672 = vcmp.ge.f32.partialorder %v669, 0.0
      %v673 = vmul.f32 %v667, 0.2
      %v674 = vmul.f32 %v669, 0.2
      %v675 = vsel %vm671, %v667, %v673
      %v676 = vsel %vm672, %v669, %v674
      %677 = vst [vmem:[%s251] sm:$0xff] %v675
      %678 = vst [vmem:[%s251 + $0x8] sm:$0xff] %v676
      %p679 = scmp.lt.s32.totalorder %s17, 1
      %s680 = scalar_select %p679, %s17, 1
      %s681 = smul.addr %s680, 2
      %s682 = smul.addr %s681, 8
      %s683 = scalar_lea.vmem %s6, %s682
      // Predicated region
      $region45: #{conv_layer_forward.1} parent=43 // pred_check
        %p684 = pneg %p166
      $region46: #{conv_layer_forward.1} parent=43 // pred_check_branch
        %686 = sbr.rel (%p684) target = $region48
      $region47: #{conv_layer_forward.1} parent=43 // pred_region
        _
      $region48: #{conv_layer_forward.1} parent=43 // pred_fallthru
        _
    $region44: #{conv_layer_forward.1} parent=5 // pred_fallthru
      _
    %p687 = scmp.le.s32.totalorder 2, %s12
    // Predicated region
    $region49: #{conv_layer_forward.1} parent=5 // pred_check
      %p688 = pneg %p687
    $region50: #{conv_layer_forward.1} parent=5 // pred_check_branch
      %690 = sbr.rel (%p688) target = $region52
    $region51: #{conv_layer_forward.1} parent=5 // pred_region
      %s691 = ssub.s32 %s12, 2
      // Predicated region
      $region53: #{conv_layer_forward.1} parent=51 // pred_check
        %p692 = pneg %p172
      $region54: #{conv_layer_forward.1} parent=51 // pred_check_branch
        %694 = sbr.rel (%p692) target = $region56
      $region55: #{conv_layer_forward.1} parent=51 // pred_region
        %p695 = scmp.lt.s32.totalorder %s18, 1
        %s696 = scalar_select %p695, %s18, 1
        %s697 = smul.addr %s696, 2
        %s698 = smul.addr %s697, 8
        %s699 = scalar_lea.vmem %s6, %s698
      $region56: #{conv_layer_forward.1} parent=51 // pred_fallthru
        _
    $region52: #{conv_layer_forward.1} parent=5 // pred_fallthru
      _
  $region6: #{conv_layer_forward.1} parent=0 // loop_footer
    %s16 = sadd.s32 1, %s12
  $region7: #{conv_layer_forward.1} parent=0 // loop_footer_branch
    %11 = sbr.rel target = $region3
  $region8: #{conv_layer_forward.1} parent=0 // loop_exit
    _

// kernel: conv_layer_forward.1
$region0: #{conv_layer_forward.1}
  #allocation0 [shape = 'u32[]', space=smem, size = 0x4, offset = 0x4, fixed_abs, tag = 'smem constant byte address 0x4 - core index']
  #allocation1 [shape = 'u32[144,128]{1,0:T(1,128)}', space=vmem, size = 0x12000, scoped, tag = 'internal scratch']
  %s0 = inlined_call_operand.vmem [shape: f32[2,4,256], index: 0, kind: input, shape index: {}]
  %s1 = inlined_call_operand.vmem [shape: f32[8,36], index: 1, kind: input, shape index: {}]
  %s2 = inlined_call_operand.vmem [shape: f32[8,1], index: 2, kind: input, shape index: {}]
  %s3 = inlined_call_operand.vmem [shape: f32[8,72], index: 3, kind: input, shape index: {}]
  %s4 = inlined_call_operand.vmem [shape: f32[8,1], index: 4, kind: input, shape index: {}]
  %s5 = inlined_call_operand.vmem [shape: f32[9,256], index: 5, kind: input, shape index: {}]
  %s6 = inlined_call_operand.vmem [shape: f32[2,8,256], index: 6, kind: output, shape index: {}]
  %s7 = sld [smem:[#allocation0]]
  $region57: #{conv_layer_forward.1} parent=0
    _
  %s9 = ssub.s32 1, %s7
  %s10 = scalar_select 0, %s9, %s7
  loop: start=0, step=1, limit=4
  $region2: #{conv_layer_forward.1} parent=0 // loop_pre_header
    _
  $region3: #{conv_layer_forward.1} parent=0 // loop_header
    %s12 = sphi 0, %s16
    %p13 = scmp.ge.s32.totalorder %s12, 4
    %s22 = sphi 0, %s24
    %s25 = sphi 0, %s22
    %s26 = sphi 0, %s25
    %s42 = sphi 0, %s26
    %s46 = sphi 0, %s46
    %s48 = sphi 0, %s46
    %s49 = sphi 0, %s48
    %s63 = sphi 0, %s49
    %s67 = sphi 0, %s67
    %s69 = sphi 0, %s67
    %s70 = sphi 0, %s69
    %s84 = sphi 0, %s70
    %s88 = sphi 0, %s88
    %s90 = sphi 0, %s88
    %s91 = sphi 0, %s90
    %s105 = sphi 0, %s91
    %s109 = sphi 0, %s109
    %s111 = sphi 0, %s109
    %s112 = sphi 0, %s111
    %s126 = sphi 0, %s112
    %s130 = sphi 0, %s130
    %s132 = sphi 0, %s130
    %s133 = sphi 0, %s132
    %s147 = sphi 0, %s133
    %s153 = sphi 0, %s155
    %s156 = sphi 0, %s153
    %s157 = sphi 0, %s156
    %s173 = sphi 0, %s157
  $region4: #{conv_layer_forward.1} parent=0 // loop_header_branch
    %15 = sbr.rel (%p13) target = $region8
  $region5: #{conv_layer_forward.1} parent=0 // loop_body
    %s17 = ssub.s32 %s12, 1
    %s18 = ssub.s32 %s12, 2
    %s19 = sadd.s32 %s12, 1
    %s20 = ssub.s32 %s12, %s19
    %p21 = scmp.eq.s32.totalorder %s20, 0
    %s23 = sadd.s32 %s22, 1
    %s24 = scalar_select %p21, %s22, %s23
    %p27 = pneg %p21
    %p28 = scmp.eq.s32.totalorder %s12, 1
    %p29 = por %p27, %p28
    %p30 = scmp.ne.s32.totalorder %s22, %s25
    %p31 = scmp.eq.s32.totalorder %s12, 0
    %p32 = por %p30, %p31
    %p33 = scmp.ne.s32.totalorder %s22, %s25
    %p34 = scmp.eq.s32.totalorder %s17, 1
    %p35 = por %p33, %p34
    %p36 = scmp.ne.s32.totalorder %s25, %s26
    %p37 = scmp.eq.s32.totalorder %s17, 0
    %p38 = por %p36, %p37
    %p39 = scmp.ne.s32.totalorder %s25, %s26
    %p40 = scmp.eq.s32.totalorder %s18, 1
    %p41 = por %p39, %p40
    %p43 = scmp.ne.s32.totalorder %s26, %s42
    %p44 = scmp.eq.s32.totalorder %s18, 0
    %p45 = por %p43, %p44
    %s47 = sadd.s32 %s46, 1
    %p50 = scmp.eq.s32.totalorder %s12, 1
    %p51 = scmp.ne.s32.totalorder %s46, %s48
    %p52 = scmp.eq.s32.totalorder %s12, 0
    %p53 = por %p51, %p52
    %p54 = scmp.ne.s32.totalorder %s46, %s48
    %p55 = scmp.eq.s32.totalorder %s17, 1
    %p56 = por %p54, %p55
    %p57 = scmp.ne.s32.totalorder %s48, %s49
    %p58 = scmp.eq.s32.totalorder %s17, 0
    %p59 = por %p57, %p58
    %p60 = scmp.ne.s32.totalorder %s48, %s49
    %p61 = scmp.eq.s32.totalorder %s18, 1
    %p62 = por %p60, %p61
    %p64 = scmp.ne.s32.totalorder %s49, %s63
    %p65 = scmp.eq.s32.totalorder %s18, 0
    %p66 = por %p64, %p65
    %s68 = sadd.s32 %s67, 1
    %p71 = scmp.eq.s32.totalorder %s12, 1
    %p72 = scmp.ne.s32.totalorder %s67, %s69
    %p73 = scmp.eq.s32.totalorder %s12, 0
    %p74 = por %p72, %p73
    %p75 = scmp.ne.s32.totalorder %s67, %s69
    %p76 = scmp.eq.s32.totalorder %s17, 1
    %p77 = por %p75, %p76
    %p78 = scmp.ne.s32.totalorder %s69, %s70
    %p79 = scmp.eq.s32.totalorder %s17, 0
    %p80 = por %p78, %p79
    %p81 = scmp.ne.s32.totalorder %s69, %s70
    %p82 = scmp.eq.s32.totalorder %s18, 1
    %p83 = por %p81, %p82
    %p85 = scmp.ne.s32.totalorder %s70, %s84
    %p86 = scmp.eq.s32.totalorder %s18, 0
    %p87 = por %p85, %p86
    %s89 = sadd.s32 %s88, 1
    %p92 = scmp.eq.s32.totalorder %s12, 1
    %p93 = scmp.ne.s32.totalorder %s88, %s90
    %p94 = scmp.eq.s32.totalorder %s12, 0
    %p95 = por %p93, %p94
    %p96 = scmp.ne.s32.totalorder %s88, %s90
    %p97 = scmp.eq.s32.totalorder %s17, 1
    %p98 = por %p96, %p97
    %p99 = scmp.ne.s32.totalorder %s90, %s91
    %p100 = scmp.eq.s32.totalorder %s17, 0
    %p101 = por %p99, %p100
    %p102 = scmp.ne.s32.totalorder %s90, %s91
    %p103 = scmp.eq.s32.totalorder %s18, 1
    %p104 = por %p102, %p103
    %p106 = scmp.ne.s32.totalorder %s91, %s105
    %p107 = scmp.eq.s32.totalorder %s18, 0
    %p108 = por %p106, %p107
    %s110 = sadd.s32 %s109, 1
    %p113 = scmp.eq.s32.totalorder %s12, 1
    %p114 = scmp.ne.s32.totalorder %s109, %s111
    %p115 = scmp.eq.s32.totalorder %s12, 0
    %p116 = por %p114, %p115
    %p117 = scmp.ne.s32.totalorder %s109, %s111
    %p118 = scmp.eq.s32.totalorder %s17, 1
    %p119 = por %p117, %p118
    %p120 = scmp.ne.s32.totalorder %s111, %s112
    %p121 = scmp.eq.s32.totalorder %s17, 0
    %p122 = por %p120, %p121
    %p123 = scmp.ne.s32.totalorder %s111, %s112
    %p124 = scmp.eq.s32.totalorder %s18, 1
    %p125 = por %p123, %p124
    %p127 = scmp.ne.s32.totalorder %s112, %s126
    %p128 = scmp.eq.s32.totalorder %s18, 0
    %p129 = por %p127, %p128
    %s131 = sadd.s32 %s130, 1
    %p134 = scmp.eq.s32.totalorder %s12, 1
    %p135 = scmp.ne.s32.totalorder %s130, %s132
    %p136 = scmp.eq.s32.totalorder %s12, 0
    %p137 = por %p135, %p136
    %p138 = scmp.ne.s32.totalorder %s130, %s132
    %p139 = scmp.eq.s32.totalorder %s17, 1
    %p140 = por %p138, %p139
    %p141 = scmp.ne.s32.totalorder %s132, %s133
    %p142 = scmp.eq.s32.totalorder %s17, 0
    %p143 = por %p141, %p142
    %p144 = scmp.ne.s32.totalorder %s132, %s133
    %p145 = scmp.eq.s32.totalorder %s18, 1
    %p146 = por %p144, %p145
    %p148 = scmp.ne.s32.totalorder %s133, %s147
    %p149 = scmp.eq.s32.totalorder %s18, 0
    %p150 = por %p148, %p149
    %s151 = ssub.s32 %s12, %s19
    %p152 = scmp.eq.s32.totalorder %s151, 0
    %s154 = sadd.s32 %s153, 1
    %s155 = scalar_select %p152, %s153, %s154
    %p158 = pneg %p152
    %p159 = scmp.eq.s32.totalorder %s12, 1
    %p160 = por %p158, %p159
    %p161 = scmp.ne.s32.totalorder %s153, %s156
    %p162 = scmp.eq.s32.totalorder %s12, 0
    %p163 = por %p161, %p162
    %p164 = scmp.ne.s32.totalorder %s153, %s156
    %p165 = scmp.eq.s32.totalorder %s17, 1
    %p166 = por %p164, %p165
    %p167 = scmp.ne.s32.totalorder %s156, %s157
    %p168 = scmp.eq.s32.totalorder %s17, 0
    %p169 = por %p167, %p168
    %p170 = scmp.ne.s32.totalorder %s156, %s157
    %p171 = scmp.eq.s32.totalorder %s18, 1
    %p172 = por %p170, %p171
    %p174 = scmp.ne.s32.totalorder %s157, %s173
    %p175 = scmp.eq.s32.totalorder %s18, 0
    %p176 = por %p174, %p175
    %p177 = scmp.le.s32.totalorder 1, %s12
    %p178 = scmp.lt.s32.totalorder %s12, 3
    %p179 = pnand %p177, %p178
    %p180 = pneg %p179
    // Predicated region
    $region9: #{conv_layer_forward.1} parent=5 // pred_check
      _
    $region10: #{conv_layer_forward.1} parent=5 // pred_check_branch
      %182 = sbr.rel (%p179) target = $region12
    $region11: #{conv_layer_forward.1} parent=5 // pred_region
      %s183 = ssub.s32 %s12, 1
      // Predicated region
      $region13: #{conv_layer_forward.1} parent=11 // pred_check
        %p184 = pneg %p59
      $region14: #{conv_layer_forward.1} parent=11 // pred_check_branch
        %186 = sbr.rel (%p184) target = $region16
      $region15: #{conv_layer_forward.1} parent=11 // pred_region
        _
      $region16: #{conv_layer_forward.1} parent=11 // pred_fallthru
        _
      // Predicated region
      $region17: #{conv_layer_forward.1} parent=11 // pred_check
        %p187 = pneg %p80
      $region18: #{conv_layer_forward.1} parent=11 // pred_check_branch
        %189 = sbr.rel (%p187) target = $region20
      $region19: #{conv_layer_forward.1} parent=11 // pred_region
        _
      $region20: #{conv_layer_forward.1} parent=11 // pred_fallthru
        _
      // Predicated region
      $region21: #{conv_layer_forward.1} parent=11 // pred_check
        %p190 = pneg %p101
      $region22: #{conv_layer_forward.1} parent=11 // pred_check_branch
        %192 = sbr.rel (%p190) target = $region24
      $region23: #{conv_layer_forward.1} parent=11 // pred_region
        _
      $region24: #{conv_layer_forward.1} parent=11 // pred_fallthru
        _
      // Predicated region
      $region25: #{conv_layer_forward.1} parent=11 // pred_check
        %p193 = pneg %p122
      $region26: #{conv_layer_forward.1} parent=11 // pred_check_branch
        %195 = sbr.rel (%p193) target = $region28
      $region27: #{conv_layer_forward.1} parent=11 // pred_region
        _
      $region28: #{conv_layer_forward.1} parent=11 // pred_fallthru
        _
      // Predicated region
      $region29: #{conv_layer_forward.1} parent=11 // pred_check
        %p196 = pneg %p143
      $region30: #{conv_layer_forward.1} parent=11 // pred_check_branch
        %198 = sbr.rel (%p196) target = $region32
      $region31: #{conv_layer_forward.1} parent=11 // pred_region
        _
      $region32: #{conv_layer_forward.1} parent=11 // pred_fallthru
        _
    $region12: #{conv_layer_forward.1} parent=5 // pred_fallthru
      _
    %p199 = scmp.lt.s32.totalorder %s12, 2
    // Predicated region
    $region33: #{conv_layer_forward.1} parent=5 // pred_check
      %p200 = pneg %p199
    $region34: #{conv_layer_forward.1} parent=5 // pred_check_branch
      %202 = sbr.rel (%p200) target = $region36
    $region35: #{conv_layer_forward.1} parent=5 // pred_region
      // Predicated region
      $region37: #{conv_layer_forward.1} parent=35 // pred_check
        %p203 = pneg %p32
      $region38: #{conv_layer_forward.1} parent=35 // pred_check_branch
        %205 = sbr.rel (%p203) target = $region40
      $region39: #{conv_layer_forward.1} parent=35 // pred_region
        %p206 = scmp.lt.s32.totalorder %s12, 1
        %s207 = scalar_select %p206, %s12, 1
        %s208 = smul.addr %s207, 2
        %s209 = smul.addr %s208, 4
        %s210 = scalar_lea.vmem %s0, %s209
      $region40: #{conv_layer_forward.1} parent=35 // pred_fallthru
        _
    $region36: #{conv_layer_forward.1} parent=5 // pred_fallthru
      _
    %p211 = scmp.le.s32.totalorder 1, %s12
    %p212 = scmp.lt.s32.totalorder %s12, 3
    %p213 = pnand %p211, %p212
    %p214 = pneg %p213
    // Predicated region
    $region41: #{conv_layer_forward.1} parent=5 // pred_check
      _
    $region42: #{conv_layer_forward.1} parent=5 // pred_check_branch
      %216 = sbr.rel (%p213) target = $region44
    $region43: #{conv_layer_forward.1} parent=5 // pred_region
      %s217 = ssub.s32 %s12, 1
      %p218 = scmp.lt.s32.totalorder %s17, 1
      %s219 = scalar_select %p218, %s17, 1
      %s220 = smul.addr %s219, 2
      %s221 = smul.addr %s220, 4
      %s222 = scalar_lea.vmem %s0, %s221
      %p223 = pneg %p38
      %p224 = pneg %p35
      %p225 = pneg %p59
      %p226 = pneg %p56
      %p227 = pneg %p80
      %p228 = pneg %p77
      %p229 = pneg %p101
      %p230 = pneg %p98
      %p231 = pneg %p122
      %p232 = pneg %p119
      %p233 = pneg %p143
      %p234 = pneg %p140
      %p235 = pneg %p169
      %p236 = pneg %p166
      %p237 = scmp.lt.s32.totalorder %s17, 1
      %s238 = scalar_select %p237, %s17, 1
      %s239 = smul.addr %s238, 2
      %s240 = smul.addr %s239, 8
      %s241 = scalar_lea.vmem %s6, %s240
      %p242 = scmp.lt.s32.totalorder %s17, 1
      %s243 = scalar_select %p242, %s17, 1
      %s244 = smul.addr %s243, 2
      %s245 = smul.addr %s244, 4
      %s246 = scalar_lea.vmem %s0, %s245
      %p247 = scmp.lt.s32.totalorder %s17, 1
      %s248 = scalar_select %p247, %s17, 1
      %s249 = smul.addr %s248, 2
      %s250 = smul.addr %s249, 8
      %s251 = scalar_lea.vmem %s6, %s250
      %v252 = vld [vmem:[%s5] sm:$0xff]
      %v253 = vld [vmem:[%s5 + $0x8] sm:$0xff]
      %v254 = vld [vmem:[%s5 + $0x10] sm:$0x1]
      %v255 = vld [vmem:[%s5 + $0x18] sm:$0x1]
      %v256 = vld [vmem:[%s1] sm:$0xff]
      %v257 = vld [vmem:[%s2] sm:$0xff]
      %v258 = vld [vmem:[%s3] sm:$0xff]
      %v259 = vld [vmem:[%s4] sm:$0xff]
      %v260 = vld [vmem:[%s246] sm:$0xff]
      %v262 = vcombine.high %v260, %v260
      %263 = vrot.lane.b32.xlu0 %v262, 17
      %v264 = vpop.permute.xlu0 %263
      %266 = vrot.lane.b32.xlu0 %v260, 17
      %v267 = vpop.permute.xlu0 %266
      %vm268 = vcmask 138240
      %v269 = vsel %vm268, %v267, %v264
      %v272 = vsel %vm268, %v264, %v267
      %v273 = vlaneseq
      %v274 = vshrl.u32 %v273, 7
      %v275 = vsub.s32 0, %v274
      %v276 = vrot.slane %v252, %v275
      %v277 = vlaneseq
      %v278 = vshrl.u32 %v277, 7
      %v279 = vsub.s32 0, %v278
      %v280 = vrot.slane %v253, %v279
      %v281 = vmul.f32 %v272, %v276
      %v282 = vmul.f32 %v269, %v280
      %283 = vrot.lane.b32.xlu0 %v262, 16
      %v284 = vpop.permute.xlu0 %283
      %286 = vrot.lane.b32.xlu0 %v260, 16
      %v287 = vpop.permute.xlu0 %286
      %vm288 = vcmask 130048
      %v289 = vsel %vm288, %v287, %v284
      %v292 = vsel %vm288, %v284, %v287
      %v293 = vlaneseq
      %v294 = vshrl.u32 %v293, 7
      %v295 = vsub.s32 1, %v294
      %v296 = vrot.slane %v252, %v295
      %v297 = vlaneseq
      %v298 = vshrl.u32 %v297, 7
      %v299 = vsub.s32 1, %v298
      %v300 = vrot.slane %v253, %v299
      %v301 = vmul.f32 %v292, %v296
      %v302 = vmul.f32 %v289, %v300
      %303 = vrot.lane.b32.xlu0 %v262, 15
      %v304 = vpop.permute.xlu0 %303
      %306 = vrot.lane.b32.xlu0 %v260, 15
      %v307 = vpop.permute.xlu0 %306
      %vm308 = vcmask 121856
      %v309 = vsel %vm308, %v307, %v304
      %v312 = vsel %vm308, %v304, %v307
      %v313 = vlaneseq
      %v314 = vshrl.u32 %v313, 7
      %v315 = vsub.s32 2, %v314
      %v316 = vrot.slane %v252, %v315
      %v317 = vlaneseq
      %v318 = vshrl.u32 %v317, 7
      %v319 = vsub.s32 2, %v318
      %v320 = vrot.slane %v253, %v319
      %v321 = vmul.f32 %v312, %v316
      %v322 = vmul.f32 %v309, %v320
      %323 = vrot.lane.b32.xlu0 %v262, 1
      %v324 = vpop.permute.xlu0 %323
      %326 = vrot.lane.b32.xlu0 %v260, 1
      %v327 = vpop.permute.xlu0 %326
      %vm328 = vcmask 7168
      %v329 = vsel %vm328, %v327, %v324
      %v332 = vsel %vm328, %v324, %v327
      %v333 = vlaneseq
      %v334 = vshrl.u32 %v333, 7
      %v335 = vsub.s32 3, %v334
      %v336 = vrot.slane %v252, %v335
      %v337 = vlaneseq
      %v338 = vshrl.u32 %v337, 7
      %v339 = vsub.s32 3, %v338
      %v340 = vrot.slane %v253, %v339
      %v341 = vmul.f32 %v332, %v336
      %v342 = vmul.f32 %v329, %v340
      %343 = vrot.lane.b32.xlu0 %v260, 127
      %v344 = vpop.permute.xlu0 %343
      %345 = vrot.lane.b32.xlu0 %v262, 127
      %v346 = vpop.permute.xlu0 %345
      %vm347 = vcmask 1039360
      %v348 = vsel %vm347, %v344, %v346
      %v352 = vsel %vm347, %v346, %v344
      %v353 = vlaneseq
      %v354 = vshrl.u32 %v353, 7
      %v355 = vsub.s32 5, %v354
      %v356 = vrot.slane %v252, %v355
      %v357 = vlaneseq
      %v358 = vshrl.u32 %v357, 7
      %v359 = vsub.s32 5, %v358
      %v360 = vrot.slane %v253, %v359
      %v361 = vmul.f32 %v348, %v356
      %v362 = vmul.f32 %v352, %v360
      %363 = vrot.lane.b32.xlu0 %v260, 113
      %v364 = vpop.permute.xlu0 %363
      %365 = vrot.lane.b32.xlu0 %v262, 113
      %v366 = vpop.permute.xlu0 %365
      %vm367 = vcmask 924672
      %v368 = vsel %vm367, %v364, %v366
      %v372 = vsel %vm367, %v366, %v364
      %v373 = vlaneseq
      %v374 = vshrl.u32 %v373, 7
      %v375 = vsub.s32 6, %v374
      %v376 = vrot.slane %v252, %v375
      %v377 = vlaneseq
      %v378 = vshrl.u32 %v377, 7
      %v379 = vsub.s32 6, %v378
      %v380 = vrot.slane %v253, %v379
      %v381 = vmul.f32 %v368, %v376
      %v382 = vmul.f32 %v372, %v380
      %383 = vrot.lane.b32.xlu0 %v260, 112
      %v384 = vpop.permute.xlu0 %383
      %385 = vrot.lane.b32.xlu0 %v262, 112
      %v386 = vpop.permute.xlu0 %385
      %vm387 = vcmask 916480
      %v388 = vsel %vm387, %v384, %v386
      %v392 = vsel %vm387, %v386, %v384
      %v393 = vlaneseq
      %v394 = vshrl.u32 %v393, 7
      %v395 = vsub.s32 7, %v394
      %v396 = vrot.slane %v252, %v395
      %v397 = vlaneseq
      %v398 = vshrl.u32 %v397, 7
      %v399 = vsub.s32 7, %v398
      %v400 = vrot.slane %v253, %v399
      %v401 = vmul.f32 %v388, %v396
      %v402 = vmul.f32 %v392, %v400
      %403 = vrot.lane.b32.xlu0 %v260, 111
      %v404 = vpop.permute.xlu0 %403
      %405 = vrot.lane.b32.xlu0 %v262, 111
      %v406 = vpop.permute.xlu0 %405
      %vm407 = vcmask 908288
      %v408 = vsel %vm407, %v404, %v406
      %v412 = vsel %vm407, %v406, %v404
      %v413 = vlaneseq
      %v414 = vshrl.u32 %v413, 7
      %v415 = vsub.s32 0, %v414
      %v416 = vrot.slane %v254, %v415
      %v417 = vlaneseq
      %v418 = vshrl.u32 %v417, 7
      %v419 = vsub.s32 0, %v418
      %v420 = vrot.slane %v255, %v419
      %v421 = vmul.f32 %v408, %v416
      %v422 = vmul.f32 %v412, %v420
      %v425 = vrot.slane %v301, 4
      %v426 = vrot.slane %v302, 4
      %v431 = vrot.slane %v341, 4
      %v432 = vrot.slane %v342, 4
      %v438 = vrot.slane %v361, 4
      %v439 = vrot.slane %v362, 4
      %v444 = vrot.slane %v401, 4
      %v445 = vrot.slane %v402, 4
      %vm448 = vcmask 1043456
      %v449 = vsel %vm448, %v281, %v425
      %v450 = vsel %vm448, %v282, %v426
      %v451 = vsel %vm448, %v321, %v431
      %v452 = vsel %vm448, %v322, %v432
      %v453 = vsel %vm448, %v260, %v438
      %v454 = vsel %vm448, %v262, %v439
      %v455 = vsel %vm448, %v381, %v444
      %v456 = vsel %vm448, %v382, %v445
      %458 = vset.pattern.permute.xlu0 0
      %459 = vperm.xlu0 %458, %v257
      %v460 = vpop.permute.xlu0 %459
      %vm462 = vcmask 293888
      %v464 = vsel %vm462, %v256, 0
      %v467 = vsel %vm448, %v421, 0
      %v470 = vsel %vm448, %v422, 0
      %472 = vmatprep.subr.mxu0 0.0
      %473 = vmatpush1.msra.mxu0 0.0
      %474 = vmatprep.subr.mxu0 0.0
      %475 = vmatpush1.msra.mxu0 0.0
      %476 = vmatprep.subr.mxu0 0.0
      %477 = vmatpush1.msra.mxu0 0.0
      %478 = vmatprep.subr.mxu0 0.0
      %479 = vmatpush1.msra.mxu0 0.0
      %480 = vmatprep.subr.mxu0 0.0
      %481 = vmatpush1.msra.mxu0 0.0
      %482 = vmatprep.subr.mxu0 0.0
      %483 = vmatpush1.msra.mxu0 0.0
      %484 = vmatprep.subr.mxu0 0.0
      %485 = vmatpush1.msra.mxu0 0.0
      %486 = vmatprep.subr.mxu0 0.0
      %487 = vmatpush1.msra.mxu0 0.0
      %488 = vmatprep.subr.mxu0 0.0
      %489 = vmatpush1.msra.mxu0 0.0
      %490 = vmatprep.subr.mxu0 0.0
      %491 = vmatpush1.msra.mxu0 0.0
      %492 = vmatprep.subr.mxu0 0.0
      %493 = vmatpush1.msra.mxu0 0.0
      %494 = vmatprep.subr.mxu0 %v470
      %495 = vmatpush1.msra.mxu0 %v467
      %496 = vmatprep.subr.mxu0 %v456
      %497 = vmatpush1.msra.mxu0 %v455
      %498 = vmatprep.subr.mxu0 %v454
      %499 = vmatpush1.msra.mxu0 %v453
      %500 = vmatprep.subr.mxu0 %v452
      %501 = vmatpush1.msra.mxu0 %v451
      %502 = vmatprep.subr.mxu0 %v450
      %503 = vmatpush1.msra.mxu0 %v449
      %504 = vmatprep.subr.mxu0 0.0
      %505 = vmatpush2.msra.mxu0 0.0
      %506 = vmatprep.subr.mxu0 0.0
      %507 = vmatpush2.msra.mxu0 0.0
      %508 = vmatprep.subr.mxu0 0.0
      %509 = vmatpush2.msra.mxu0 0.0
      %510 = vmatprep.subr.mxu0 0.0
      %511 = vmatpush2.msra.mxu0 0.0
      %512 = vmatprep.subr.mxu0 0.0
      %513 = vmatpush2.msra.mxu0 0.0
      %514 = vmatprep.subr.mxu0 0.0
      %515 = vmatpush2.msra.mxu0 0.0
      %516 = vmatprep.subr.mxu0 0.0
      %517 = vmatpush2.msra.mxu0 0.0
      %518 = vmatprep.subr.mxu0 0.0
      %519 = vmatpush2.msra.mxu0 0.0
      %520 = vmatprep.subr.mxu0 0.0
      %521 = vmatpush2.msra.mxu0 0.0
      %522 = vmatprep.subr.mxu0 0.0
      %523 = vmatpush2.msra.mxu0 0.0
      %524 = vmatprep.subr.mxu0 0.0
      %525 = vmatpush2.msra.mxu0 0.0
      %526 = vmatprep.subr.mxu0 0.0
      %527 = vmatpush2.msra.mxu0 0.0
      %528 = vmatprep.subr.mxu0 0.0
      %529 = vmatpush2.msra.mxu0 0.0
      %530 = vmatprep.subr.mxu0 0.0
      %531 = vmatpush2.msra.mxu0 0.0
      %532 = vmatprep.subr.mxu0 0.0
      %533 = vmatpush2.msra.mxu0 0.0
      %534 = vmatprep.subr.mxu0 0.0
      %535 = vmatpush2.msra.mxu0 0.0
      %536 = vmatprep.mubr.f32.mxu0 0.0
      %537 = vmatmul.mubr.f32.gmra.mxu0 %v464
      %v538 = vpop.f32.mrf.mxu0
      %v539 = vadd.f32 %v460, %v538
      %v540 = vpop.f32.mrf.mxu0
      %v541 = vadd.f32 %v460, %v540
      %542 = vdwg.mxu0
      %vm543 = vcmp.ge.f32.partialorder %v539, 0.0
      %vm544 = vcmp.ge.f32.partialorder %v541, 0.0
      %v545 = vmul.f32 %v539, 0.2
      %v546 = vmul.f32 %v541, 0.2
      %v547 = vsel %vm543, %v539, %v545
      %v548 = vsel %vm544, %v541, %v546
      %550 = vrot.lane.b32.xlu0 %v548, 17
      %v551 = vpop.permute.xlu0 %550
      %554 = vrot.lane.b32.xlu0 %v547, 17
      %v555 = vpop.permute.xlu0 %554
      %v556 = vsel %vm268, %v555, %v551
      %v559 = vsel %vm268, %v551, %v555
      %v560 = vmul.f32 %v559, %v276
      %v561 = vmul.f32 %v556, %v280
      %562 = vrot.lane.b32.xlu0 %v548, 16
      %v563 = vpop.permute.xlu0 %562
      %565 = vrot.lane.b32.xlu0 %v547, 16
      %v566 = vpop.permute.xlu0 %565
      %v567 = vsel %vm288, %v566, %v563
      %v570 = vsel %vm288, %v563, %v566
      %v571 = vmul.f32 %v570, %v296
      %v572 = vmul.f32 %v567, %v300
      %573 = vrot.lane.b32.xlu0 %v548, 15
      %v574 = vpop.permute.xlu0 %573
      %576 = vrot.lane.b32.xlu0 %v547, 15
      %v577 = vpop.permute.xlu0 %576
      %v578 = vsel %vm308, %v577, %v574
      %v581 = vsel %vm308, %v574, %v577
      %v582 = vmul.f32 %v581, %v316
      %v583 = vmul.f32 %v578, %v320
      %584 = vrot.lane.b32.xlu0 %v548, 1
      %v585 = vpop.permute.xlu0 %584
      %587 = vrot.lane.b32.xlu0 %v547, 1
      %v588 = vpop.permute.xlu0 %587
      %v589 = vsel %vm328, %v588, %v585
      %v592 = vsel %vm328, %v585, %v588
      %v593 = vmul.f32 %v592, %v336
      %v594 = vmul.f32 %v589, %v340
      %595 = vrot.lane.b32.xlu0 %v547, 127
      %v596 = vpop.permute.xlu0 %595
      %597 = vrot.lane.b32.xlu0 %v548, 127
      %v598 = vpop.permute.xlu0 %597
      %v599 = vsel %vm347, %v596, %v598
      %v603 = vsel %vm347, %v598, %v596
      %v604 = vmul.f32 %v599, %v356
      %v605 = vmul.f32 %v603, %v360
      %606 = vrot.lane.b32.xlu0 %v547, 113
      %v607 = vpop.permute.xlu0 %606
      %608 = vrot.lane.b32.xlu0 %v548, 113
      %v609 = vpop.permute.xlu0 %608
      %v610 = vsel %vm367, %v607, %v609
      %v614 = vsel %vm367, %v609, %v607
      %v615 = vmul.f32 %v610, %v376
      %v616 = vmul.f32 %v614, %v380
      %617 = vrot.lane.b32.xlu0 %v547, 112
      %v618 = vpop.permute.xlu0 %617
      %619 = vrot.lane.b32.xlu0 %v548, 112
      %v620 = vpop.permute.xlu0 %619
      %v621 = vsel %vm387, %v618, %v620
      %v625 = vsel %vm387, %v620, %v618
      %v626 = vmul.f32 %v621, %v396
      %v627 = vmul.f32 %v625, %v400
      %628 = vrot.lane.b32.xlu0 %v547, 111
      %v629 = vpop.permute.xlu0 %628
      %630 = vrot.lane.b32.xlu0 %v548, 111
      %v631 = vpop.permute.xlu0 %630
      %v632 = vsel %vm407, %v629, %v631
      %v636 = vsel %vm407, %v631, %v629
      %v637 = vmul.f32 %v632, %v416
      %v638 = vmul.f32 %v636, %v420
      %640 = vset.pattern.permute.xlu0 0
      %641 = vperm.xlu0 %640, %v259
      %v642 = vpop.permute.xlu0 %641
      %vm644 = vcmask 588800
      %v646 = vsel %vm644, %v258, 0
      %648 = vmatprep.subr.mxu0 0.0
      %649 = vmatpush1.msra.mxu0 0.0
      %650 = vmatprep.subr.mxu0 0.0
      %651 = vmatpush1.msra.mxu0 0.0
      %652 = vmatprep.subr.mxu0 0.0
      %653 = vmatpush1.msra.mxu0 0.0
      %654 = vmatprep.subr.mxu0 0.0
      %655 = vmatpush1.msra.mxu0 0.0
      %656 = vmatprep.subr.mxu0 0.0
      %657 = vmatpush1.msra.mxu0 0.0
      %658 = vmatprep.subr.mxu0 0.0
      %659 = vmatpush1.msra.mxu0 0.0
      %660 = vmatprep.subr.mxu0 0.0
      %661 = vmatpush1.msra.mxu0 0.0
      %662 = vmatprep.subr.mxu0 %v638
      %663 = vmatpush1.msra.mxu0 %v637
      %664 = vmatprep.subr.mxu0 %v627
      %665 = vmatpush1.msra.mxu0 %v626
      %666 = vmatprep.subr.mxu0 %v616
      %667 = vmatpush1.msra.mxu0 %v615
      %668 = vmatprep.subr.mxu0 %v605
      %669 = vmatpush1.msra.mxu0 %v604
      %670 = vmatprep.subr.mxu0 %v548
      %671 = vmatpush1.msra.mxu0 %v547
      %672 = vmatprep.subr.mxu0 %v594
      %673 = vmatpush1.msra.mxu0 %v593
      %674 = vmatprep.subr.mxu0 %v583
      %675 = vmatpush1.msra.mxu0 %v582
      %676 = vmatprep.subr.mxu0 %v572
      %677 = vmatpush1.msra.mxu0 %v571
      %678 = vmatprep.subr.mxu0 %v561
      %679 = vmatpush1.msra.mxu0 %v560
      %680 = vmatprep.subr.mxu0 0.0
      %681 = vmatpush2.msra.mxu0 0.0
      %682 = vmatprep.subr.mxu0 0.0
      %683 = vmatpush2.msra.mxu0 0.0
      %684 = vmatprep.subr.mxu0 0.0
      %685 = vmatpush2.msra.mxu0 0.0
      %686 = vmatprep.subr.mxu0 0.0
      %687 = vmatpush2.msra.mxu0 0.0
      %688 = vmatprep.subr.mxu0 0.0
      %689 = vmatpush2.msra.mxu0 0.0
      %690 = vmatprep.subr.mxu0 0.0
      %691 = vmatpush2.msra.mxu0 0.0
      %692 = vmatprep.subr.mxu0 0.0
      %693 = vmatpush2.msra.mxu0 0.0
      %694 = vmatprep.subr.mxu0 0.0
      %695 = vmatpush2.msra.mxu0 0.0
      %696 = vmatprep.subr.mxu0 0.0
      %697 = vmatpush2.msra.mxu0 0.0
      %698 = vmatprep.subr.mxu0 0.0
      %699 = vmatpush2.msra.mxu0 0.0
      %700 = vmatprep.subr.mxu0 0.0
      %701 = vmatpush2.msra.mxu0 0.0
      %702 = vmatprep.subr.mxu0 0.0
      %703 = vmatpush2.msra.mxu0 0.0
      %704 = vmatprep.subr.mxu0 0.0
      %705 = vmatpush2.msra.mxu0 0.0
      %706 = vmatprep.subr.mxu0 0.0
      %707 = vmatpush2.msra.mxu0 0.0
      %708 = vmatprep.subr.mxu0 0.0
      %709 = vmatpush2.msra.mxu0 0.0
      %710 = vmatprep.subr.mxu0 0.0
      %711 = vmatpush2.msra.mxu0 0.0
      %712 = vmatprep.mubr.f32.mxu0 0.0
      %713 = vmatmul.mubr.f32.gmra.mxu0 %v646
      %v714 = vpop.f32.mrf.mxu0
      %v715 = vadd.f32 %v642, %v714
      %v716 = vpop.f32.mrf.mxu0
      %v717 = vadd.f32 %v642, %v716
      %718 = vdwg.mxu0
      %vm719 = vcmp.ge.f32.partialorder %v715, 0.0
      %vm720 = vcmp.ge.f32.partialorder %v717, 0.0
      %v721 = vmul.f32 %v715, 0.2
      %v722 = vmul.f32 %v717, 0.2
      %v723 = vsel %vm719, %v715, %v721
      %v724 = vsel %vm720, %v717, %v722
      %725 = vst [vmem:[%s251] sm:$0xff] %v723
      %726 = vst [vmem:[%s251 + $0x8] sm:$0xff] %v724
      %p727 = scmp.lt.s32.totalorder %s17, 1
      %s728 = scalar_select %p727, %s17, 1
      %s729 = smul.addr %s728, 2
      %s730 = smul.addr %s729, 8
      %s731 = scalar_lea.vmem %s6, %s730
      // Predicated region
      $region45: #{conv_layer_forward.1} parent=43 // pred_check
        %p732 = pneg %p166
      $region46: #{conv_layer_forward.1} parent=43 // pred_check_branch
        %734 = sbr.rel (%p732) target = $region48
      $region47: #{conv_layer_forward.1} parent=43 // pred_region
        _
      $region48: #{conv_layer_forward.1} parent=43 // pred_fallthru
        _
    $region44: #{conv_layer_forward.1} parent=5 // pred_fallthru
      _
    %p735 = scmp.le.s32.totalorder 2, %s12
    // Predicated region
    $region49: #{conv_layer_forward.1} parent=5 // pred_check
      %p736 = pneg %p735
    $region50: #{conv_layer_forward.1} parent=5 // pred_check_branch
      %738 = sbr.rel (%p736) target = $region52
    $region51: #{conv_layer_forward.1} parent=5 // pred_region
      %s739 = ssub.s32 %s12, 2
      // Predicated region
      $region53: #{conv_layer_forward.1} parent=51 // pred_check
        %p740 = pneg %p172
      $region54: #{conv_layer_forward.1} parent=51 // pred_check_branch
        %742 = sbr.rel (%p740) target = $region56
      $region55: #{conv_layer_forward.1} parent=51 // pred_region
        %p743 = scmp.lt.s32.totalorder %s18, 1
        %s744 = scalar_select %p743, %s18, 1
        %s745 = smul.addr %s744, 2
        %s746 = smul.addr %s745, 8
        %s747 = scalar_lea.vmem %s6, %s746
      $region56: #{conv_layer_forward.1} parent=51 // pred_fallthru
        _
    $region52: #{conv_layer_forward.1} parent=5 // pred_fallthru
      _
  $region6: #{conv_layer_forward.1} parent=0 // loop_footer
    %s16 = sadd.s32 1, %s12
  $region7: #{conv_layer_forward.1} parent=0 // loop_footer_branch
    %11 = sbr.rel target = $region3
  $region8: #{conv_layer_forward.1} parent=0 // loop_exit
    _

</llo_original>
